<compile_context>
chip_gen: v5e
topology: v5e:2x2
jax: 0.10.0
libtpu: 0.0.40
codegen_flags: <defaults>
</compile_context>

<pallas_src>
import functools

import jax
import jax.numpy as jnp
import numpy as np
from jax.experimental import pallas as pl
from jax.experimental.pallas import tpu as pltpu


# ----------------------------- Pallas kernel ------------------------------- #

def _conv_block_kernel(p_ref, w_ref, b_ref, g_ref, be_ref, o_ref, y_scr, *,
                       n_img, oh, ow, oh2, ow2, inv_m, eps):
    """Fused ConvBlock for one branch (whole batch in one block).

    Conv-as-matmul + bias -> training-mode BatchNorm (batch stats) -> ReLU ->
    2x2 max-pool.  Only the pooled result is written to HBM.

      p_ref  : (M, K)    im2col patches, M = N*OH*OW, K = KH*KW*C
      w_ref  : (K, OC)   conv weights
      b/g/be : (1, OC)   conv bias, BN gamma, BN beta
      o_ref  : (N*OH2*OW2, OC)  pooled output, rows ordered (n, oh2, ow2)
      y_scr  : (M, OC)   VMEM scratch for the post-BN/ReLU activation
    """
    # ---- conv matmul + bias (f32 accumulation on the MXU) ------------------
    acc = jnp.dot(p_ref[...], w_ref[...], preferred_element_type=jnp.float32)
    acc = acc + b_ref[...].astype(jnp.float32)

    # ---- BatchNorm batch statistics (two-pass centered; whole M resident) --
    mean = jnp.sum(acc, axis=0, keepdims=True) * inv_m                 # (1, OC)
    centered = acc - mean
    var = jnp.sum(centered * centered, axis=0, keepdims=True) * inv_m
    scale = g_ref[...].astype(jnp.float32) * jax.lax.rsqrt(var + eps)  # EUP
    shift = be_ref[...].astype(jnp.float32) - mean * scale

    # ---- BN affine + ReLU, kept in VMEM (never written to HBM) -------------
    y_scr[...] = jnp.maximum(acc * scale + shift, 0.0)

    # ---- 2x2 max-pool via strided VMEM reads --------------------------------
    # Row m of y_scr is (n, h, w) with m = n*OH*OW + h*OW + w.  For each
    # (n, oh2) output row-group, the four pool taps are stride-2 row slices.
    # All indices are compile-time constants (static Python loop).  Rows that
    # the pool trims (odd OH/OW) still contribute to the BN stats above but
    # are never read here -- matches PyTorch semantics.
    # TODO(synk): at production N/OH switch this to lax.fori_loop (or a grid
    # axis) to avoid unrolling thousands of groups.
    for i in range(n_img * oh2):
        n = i // oh2
        h2 = i - n * oh2
        src = n * oh * ow + 2 * h2 * ow
        t00 = y_scr[pl.ds(src, ow2, 2), :]
        t01 = y_scr[pl.ds(src + 1, ow2, 2), :]
        t10 = y_scr[pl.ds(src + ow, ow2, 2), :]
        t11 = y_scr[pl.ds(src + ow + 1, ow2, 2), :]
        o_ref[pl.ds(i * ow2, ow2), :] = jnp.maximum(jnp.maximum(t00, t01),
                                                    jnp.maximum(t10, t11))


# ------------------------------ host wrapper ------------------------------- #

@functools.partial(jax.jit, static_argnames=("stride", "eps", "mxu_dtype"))
def parallel_convolution_forward(x, x2, params, stride, eps=1e-5,
                                 mxu_dtype=jnp.float32):
    """ParallelConvolution.forward: two ConvBlocks, fused into 1 pallas_call.

    Each ConvBlock = Conv2d -> BatchNorm2d (training batch stats) -> ReLU ->
    MaxPool2d(2).  `mxu_dtype=jnp.bfloat16` recommended at production channel
    counts (accumulation stays f32 via preferred_element_type).
    """
    N, C, H, W = x.shape
    OC, _, KH, KW = params["w1"].shape
    sh = sw = stride
    OH = (H - KH) // sh + 1
    OW = (W - KW) // sw + 1
    OH2, OW2 = OH // 2, OW // 2
    M = N * OH * OW
    MP = N * OH2 * OW2
    K = KH * KW * C

    # ---- glue: im2col patches for both branches, stacked on a branch axis --
    # TODO(synk): at production sizes, replace the materialized im2col with
    # KH*KW shifted (M, C) @ (C, OC) accumulation inside the kernel to remove
    # the ~KH*KW x duplicated HBM reads of the input (biggest win on v5e/v6e).
    def im2col(inp_nchw):
        xh = jnp.transpose(inp_nchw, (0, 2, 3, 1)).astype(jnp.float32)  # NHWC
        slabs = []
        for kh in range(KH):
            for kw in range(KW):
                slabs.append(xh[:, kh:kh + (OH - 1) * sh + 1:sh,
                                kw:kw + (OW - 1) * sw + 1:sw, :])
        return jnp.stack(slabs, axis=3).reshape(M, K)

    patches = jnp.stack([im2col(x), im2col(x2)], axis=0).astype(mxu_dtype)  # (2,M,K)

    def wmat(wgt):
        return jnp.transpose(wgt, (2, 3, 1, 0)).reshape(K, OC)

    w_st = jnp.stack([wmat(params["w1"]), wmat(params["w2"])], 0).astype(mxu_dtype)
    b_st = jnp.stack([params["b1"].reshape(1, OC),
                      params["b2"].reshape(1, OC)], 0).astype(jnp.float32)
    g_st = jnp.stack([params["g1"].reshape(1, OC),
                      params["g2"].reshape(1, OC)], 0).astype(jnp.float32)
    be_st = jnp.stack([params["be1"].reshape(1, OC),
                       params["be2"].reshape(1, OC)], 0).astype(jnp.float32)

    kernel = functools.partial(_conv_block_kernel, n_img=N, oh=OH, ow=OW,
                               oh2=OH2, ow2=OW2, inv_m=1.0 / M, eps=eps)

    # Single whole-M block per branch (patches ~56 KB here, far under VMEM);
    # grid axis = branch, "parallel" so v7x runs the two branches on its 2 TCs.
    # TODO(synk): for production M on v7x (64 MiB VMEM), tile M on the grid and
    # switch the BN stats to per-tile sum/sum-of-squares accumulators finalized
    # on the last tile (two-pass whole-M variance needs the full block).
    # TODO(synk): with OC=8 the output lane dim is 8/128 occupied; at production
    # widths keep OC a multiple of 128 (or fold OW2*OC into the lane dim).
    pooled_flat = pl.pallas_call(
        kernel,
        out_shape=jax.ShapeDtypeStruct((2, MP, OC), jnp.float32),
        grid=(2,),
        in_specs=[pl.BlockSpec((None, M, K), lambda b: (b, 0, 0)),
                  pl.BlockSpec((None, K, OC), lambda b: (b, 0, 0)),
                  pl.BlockSpec((None, 1, OC), lambda b: (b, 0, 0)),
                  pl.BlockSpec((None, 1, OC), lambda b: (b, 0, 0)),
                  pl.BlockSpec((None, 1, OC), lambda b: (b, 0, 0))],
        out_specs=pl.BlockSpec((None, MP, OC), lambda b: (b, 0, 0)),
        scratch_shapes=[pltpu.VMEM((M, OC), jnp.float32)],
        compiler_params=pltpu.CompilerParams(
            dimension_semantics=("parallel",)),
    )(patches, w_st, b_st, g_st, be_st)

    # Back to NCHW per branch (PyTorch convention).  A consumer that accepts
    # NHWC could skip these transposes (saves one HBM pass per branch).
    pooled = pooled_flat.reshape(2, N, OH2, OW2, OC)
    out1 = jnp.transpose(pooled[0], (0, 3, 1, 2))
    out2 = jnp.transpose(pooled[1], (0, 3, 1, 2))
    return out1, out2


# ------------------------- pure-JAX reference check ------------------------ #

def _reference_conv_block(x_nchw, weight, bias, gamma, beta, stride, eps=1e-5):
    y = jax.lax.conv_general_dilated(
        x_nchw.astype(jnp.float32), weight.astype(jnp.float32),
        (stride, stride), "VALID",
        dimension_numbers=("NCHW", "OIHW", "NCHW"),
        precision=jax.lax.Precision.HIGHEST)
    y = y + bias.reshape(1, -1, 1, 1)
    mean = jnp.mean(y, axis=(0, 2, 3), keepdims=True)
    var = jnp.mean((y - mean) ** 2, axis=(0, 2, 3), keepdims=True)
    y = (y - mean) / jnp.sqrt(var + eps)
    y = y * gamma.reshape(1, -1, 1, 1) + beta.reshape(1, -1, 1, 1)
    y = jnp.maximum(y, 0.0)
    n, c, h, w = y.shape
    y = y[:, :, :(h // 2) * 2, :(w // 2) * 2]
    y = y.reshape(n, c, h // 2, 2, w // 2, 2)
    return jnp.max(y, axis=(3, 5))


# ----------------------------------- main ----------------------------------- #

if __name__ == "__main__":
    N, C_IN, C_OUT = 2, 4, 8
    H = W = 16
    KERNEL, STRIDE = 3, 1

    key = jax.random.PRNGKey(0)
    ks = jax.random.split(key, 10)
    params = {
        "w1": 0.1 * jax.random.normal(ks[0], (C_OUT, C_IN, KERNEL, KERNEL), jnp.float32),
        "b1": 0.1 * jax.random.normal(ks[1], (C_OUT,), jnp.float32),
        "g1": 1.0 + 0.1 * jax.random.normal(ks[2], (C_OUT,), jnp.float32),
        "be1": 0.1 * jax.random.normal(ks[3], (C_OUT,), jnp.float32),
        "w2": 0.1 * jax.random.normal(ks[4], (C_OUT, C_IN, KERNEL, KERNEL), jnp.float32),
        "b2": 0.1 * jax.random.normal(ks[5], (C_OUT,), jnp.float32),
        "g2": 1.0 + 0.1 * jax.random.normal(ks[6], (C_OUT,), jnp.float32),
        "be2": 0.1 * jax.random.normal(ks[7], (C_OUT,), jnp.float32),
    }
    x = jax.random.normal(ks[8], (N, C_IN, H, W), jnp.float32)
    x2 = jax.random.normal(ks[9], (N, C_IN, H, W), jnp.float32)

    out1, out2 = parallel_convolution_forward(x, x2, params, STRIDE)
    out1 = jax.block_until_ready(out1)
    out2 = jax.block_until_ready(out2)

    ref1 = _reference_conv_block(x, params["w1"], params["b1"],
                                 params["g1"], params["be1"], STRIDE)
    ref2 = _reference_conv_block(x2, params["w2"], params["b2"],
                                 params["g2"], params["be2"], STRIDE)

    np.testing.assert_allclose(np.asarray(out1), np.asarray(ref1), rtol=2e-3, atol=2e-3)
    np.testing.assert_allclose(np.asarray(out2), np.asarray(ref2), rtol=2e-3, atol=2e-3)
    assert out1.shape == (N, C_OUT, (H - KERNEL + 1) // 2, (W - KERNEL + 1) // 2)
    assert out2.shape == out1.shape

    print("KERNEL_OK")
</pallas_src>

<mosaic_0001>
module attributes {stable_mosaic.version = 11 : i64} {
  func.func @_conv_block_kernel(%arg0: i32, %arg1: memref<1x392x36xf32, #tpu.memory_space<vmem>>, %arg2: memref<1x36x8xf32, #tpu.memory_space<vmem>>, %arg3: memref<1x1x8xf32, #tpu.memory_space<vmem>>, %arg4: memref<1x1x8xf32, #tpu.memory_space<vmem>>, %arg5: memref<1x1x8xf32, #tpu.memory_space<vmem>>, %arg6: memref<1x98x8xf32, #tpu.memory_space<vmem>>, %arg7: memref<392x8xf32, #tpu.memory_space<vmem>>) attributes {dimension_semantics = [#tpu.dimension_semantics<parallel>], iteration_bounds = array<i64: 2>, scalar_prefetch = 0 : i64, scratch_operands = 1 : i64, tpu.core_type = #tpu.core_type<tc>, window_params = [{transform_indices = @transform_0, window_bounds = array<i64: 1, 392, 36>}, {transform_indices = @transform_1, window_bounds = array<i64: 1, 36, 8>}, {transform_indices = @transform_2, window_bounds = array<i64: 1, 1, 8>}, {transform_indices = @transform_3, window_bounds = array<i64: 1, 1, 8>}, {transform_indices = @transform_4, window_bounds = array<i64: 1, 1, 8>}, {transform_indices = @transform_5, window_bounds = array<i64: 1, 98, 8>}]} {
    %c0 = arith.constant 0 : index
    %c0_0 = arith.constant 0 : index
    %c0_1 = arith.constant 0 : index
    %0 = vector.load %arg1[%c0, %c0_0, %c0_1] : memref<1x392x36xf32, #tpu.memory_space<vmem>>, vector<1x392x36xf32>
    %1 = vector.shape_cast %0 : vector<1x392x36xf32> to vector<392x36xf32>
    %c0_2 = arith.constant 0 : index
    %c0_3 = arith.constant 0 : index
    %c0_4 = arith.constant 0 : index
    %2 = vector.load %arg2[%c0_2, %c0_3, %c0_4] : memref<1x36x8xf32, #tpu.memory_space<vmem>>, vector<1x36x8xf32>
    %3 = vector.shape_cast %2 : vector<1x36x8xf32> to vector<36x8xf32>
    %cst = arith.constant dense<0.000000e+00> : vector<392x8xf32>
    %4 = tpu.matmul %1, %3, %cst {dimension_numbers = #tpu.dot_dimension_numbers<[1], [0], [0], [1], [0, 0, 1, 1], [], []>} : vector<392x36xf32>, vector<36x8xf32>, vector<392x8xf32> -> vector<392x8xf32>
    %c0_5 = arith.constant 0 : index
    %c0_6 = arith.constant 0 : index
    %c0_7 = arith.constant 0 : index
    %5 = vector.load %arg3[%c0_5, %c0_6, %c0_7] : memref<1x1x8xf32, #tpu.memory_space<vmem>>, vector<1x1x8xf32>
    %6 = vector.shape_cast %5 : vector<1x1x8xf32> to vector<1x8xf32>
    %7 = vector.broadcast %6 : vector<1x8xf32> to vector<392x8xf32>
    %8 = arith.addf %4, %7 : vector<392x8xf32>
    %cst_8 = arith.constant dense<0.000000e+00> : vector<8xf32>
    %9 = vector.multi_reduction <add>, %8, %cst_8 [0] : vector<392x8xf32> to vector<8xf32>
    %10 = vector.shape_cast %9 : vector<8xf32> to vector<1x8xf32>
    %cst_9 = arith.constant 0.00255102036 : f32
    %11 = vector.broadcast %cst_9 : f32 to vector<1x8xf32>
    %12 = arith.mulf %10, %11 : vector<1x8xf32>
    %13 = vector.broadcast %12 : vector<1x8xf32> to vector<392x8xf32>
    %14 = arith.subf %8, %13 : vector<392x8xf32>
    %15 = arith.mulf %14, %14 : vector<392x8xf32>
    %cst_10 = arith.constant dense<0.000000e+00> : vector<8xf32>
    %16 = vector.multi_reduction <add>, %15, %cst_10 [0] : vector<392x8xf32> to vector<8xf32>
    %17 = vector.shape_cast %16 : vector<8xf32> to vector<1x8xf32>
    %cst_11 = arith.constant 0.00255102036 : f32
    %18 = vector.broadcast %cst_11 : f32 to vector<1x8xf32>
    %19 = arith.mulf %17, %18 : vector<1x8xf32>
    %c0_12 = arith.constant 0 : index
    %c0_13 = arith.constant 0 : index
    %c0_14 = arith.constant 0 : index
    %20 = vector.load %arg4[%c0_12, %c0_13, %c0_14] : memref<1x1x8xf32, #tpu.memory_space<vmem>>, vector<1x1x8xf32>
    %21 = vector.shape_cast %20 : vector<1x1x8xf32> to vector<1x8xf32>
    %cst_15 = arith.constant 9.99999974E-6 : f32
    %22 = vector.broadcast %cst_15 : f32 to vector<1x8xf32>
    %23 = arith.addf %19, %22 : vector<1x8xf32>
    %24 = math.rsqrt %23 : vector<1x8xf32>
    %25 = arith.mulf %21, %24 : vector<1x8xf32>
    %c0_16 = arith.constant 0 : index
    %c0_17 = arith.constant 0 : index
    %c0_18 = arith.constant 0 : index
    %26 = vector.load %arg5[%c0_16, %c0_17, %c0_18] : memref<1x1x8xf32, #tpu.memory_space<vmem>>, vector<1x1x8xf32>
    %27 = vector.shape_cast %26 : vector<1x1x8xf32> to vector<1x8xf32>
    %28 = arith.mulf %12, %25 : vector<1x8xf32>
    %29 = arith.subf %27, %28 : vector<1x8xf32>
    %30 = vector.broadcast %25 : vector<1x8xf32> to vector<392x8xf32>
    %31 = arith.mulf %8, %30 : vector<392x8xf32>
    %32 = vector.broadcast %29 : vector<1x8xf32> to vector<392x8xf32>
    %33 = arith.addf %31, %32 : vector<392x8xf32>
    %cst_19 = arith.constant 0.000000e+00 : f32
    %34 = vector.broadcast %cst_19 : f32 to vector<392x8xf32>
    %35 = arith.maximumf %33, %34 : vector<392x8xf32>
    %c0_20 = arith.constant 0 : index
    %c0_21 = arith.constant 0 : index
    %36 = vector.load %arg7[%c0_20, %c0_21] : memref<392x8xf32, #tpu.memory_space<vmem>>, vector<392x8xf32>
    tpu.vector_store %arg7[%c0_20, %c0_21], %35 {strides = array<i32>} : memref<392x8xf32, #tpu.memory_space<vmem>>, vector<392x8xf32>,
    %c0_22 = arith.constant 0 : index
    %c0_23 = arith.constant 0 : index
    %37 = tpu.strided_load %arg7[%c0_22, %c0_23] {strides = array<i32: 2, 1>} : memref<392x8xf32, #tpu.memory_space<vmem>>, vector<7x8xf32>
    %c1 = arith.constant 1 : index
    %c0_24 = arith.constant 0 : index
    %38 = tpu.strided_load %arg7[%c1, %c0_24] {strides = array<i32: 2, 1>} : memref<392x8xf32, #tpu.memory_space<vmem>>, vector<7x8xf32>
    %c14 = arith.constant 14 : index
    %c0_25 = arith.constant 0 : index
    %39 = tpu.strided_load %arg7[%c14, %c0_25] {strides = array<i32: 2, 1>} : memref<392x8xf32, #tpu.memory_space<vmem>>, vector<7x8xf32>
    %c15 = arith.constant 15 : index
    %c0_26 = arith.constant 0 : index
    %40 = tpu.strided_load %arg7[%c15, %c0_26] {strides = array<i32: 2, 1>} : memref<392x8xf32, #tpu.memory_space<vmem>>, vector<7x8xf32>
    %41 = arith.maximumf %37, %38 : vector<7x8xf32>
    %42 = arith.maximumf %39, %40 : vector<7x8xf32>
    %43 = arith.maximumf %41, %42 : vector<7x8xf32>
    %c0_27 = arith.constant 0 : index
    %c0_28 = arith.constant 0 : index
    %c0_29 = arith.constant 0 : index
    %44 = vector.load %arg6[%c0_27, %c0_28, %c0_29] : memref<1x98x8xf32, #tpu.memory_space<vmem>>, vector<1x7x8xf32>
    %45 = vector.shape_cast %44 : vector<1x7x8xf32> to vector<7x8xf32>
    %46 = vector.shape_cast %43 : vector<7x8xf32> to vector<1x7x8xf32>
    tpu.vector_store %arg6[%c0_27, %c0_28, %c0_29], %46 {strides = array<i32>} : memref<1x98x8xf32, #tpu.memory_space<vmem>>, vector<1x7x8xf32>,
    %c28 = arith.constant 28 : index
    %c0_30 = arith.constant 0 : index
    %47 = tpu.strided_load %arg7[%c28, %c0_30] {strides = array<i32: 2, 1>} : memref<392x8xf32, #tpu.memory_space<vmem>>, vector<7x8xf32>
    %c29 = arith.constant 29 : index
    %c0_31 = arith.constant 0 : index
    %48 = tpu.strided_load %arg7[%c29, %c0_31] {strides = array<i32: 2, 1>} : memref<392x8xf32, #tpu.memory_space<vmem>>, vector<7x8xf32>
    %c42 = arith.constant 42 : index
    %c0_32 = arith.constant 0 : index
    %49 = tpu.strided_load %arg7[%c42, %c0_32] {strides = array<i32: 2, 1>} : memref<392x8xf32, #tpu.memory_space<vmem>>, vector<7x8xf32>
    %c43 = arith.constant 43 : index
    %c0_33 = arith.constant 0 : index
    %50 = tpu.strided_load %arg7[%c43, %c0_33] {strides = array<i32: 2, 1>} : memref<392x8xf32, #tpu.memory_space<vmem>>, vector<7x8xf32>
    %51 = arith.maximumf %47, %48 : vector<7x8xf32>
    %52 = arith.maximumf %49, %50 : vector<7x8xf32>
    %53 = arith.maximumf %51, %52 : vector<7x8xf32>
    %c0_34 = arith.constant 0 : index
    %c7 = arith.constant 7 : index
    %c0_35 = arith.constant 0 : index
    %54 = vector.load %arg6[%c0_34, %c7, %c0_35] : memref<1x98x8xf32, #tpu.memory_space<vmem>>, vector<1x7x8xf32>
    %55 = vector.shape_cast %54 : vector<1x7x8xf32> to vector<7x8xf32>
    %56 = vector.shape_cast %53 : vector<7x8xf32> to vector<1x7x8xf32>
    tpu.vector_store %arg6[%c0_34, %c7, %c0_35], %56 {strides = array<i32>} : memref<1x98x8xf32, #tpu.memory_space<vmem>>, vector<1x7x8xf32>,
    %c56 = arith.constant 56 : index
    %c0_36 = arith.constant 0 : index
    %57 = tpu.strided_load %arg7[%c56, %c0_36] {strides = array<i32: 2, 1>} : memref<392x8xf32, #tpu.memory_space<vmem>>, vector<7x8xf32>
    %c57 = arith.constant 57 : index
    %c0_37 = arith.constant 0 : index
    %58 = tpu.strided_load %arg7[%c57, %c0_37] {strides = array<i32: 2, 1>} : memref<392x8xf32, #tpu.memory_space<vmem>>, vector<7x8xf32>
    %c70 = arith.constant 70 : index
    %c0_38 = arith.constant 0 : index
    %59 = tpu.strided_load %arg7[%c70, %c0_38] {strides = array<i32: 2, 1>} : memref<392x8xf32, #tpu.memory_space<vmem>>, vector<7x8xf32>
    %c71 = arith.constant 71 : index
    %c0_39 = arith.constant 0 : index
    %60 = tpu.strided_load %arg7[%c71, %c0_39] {strides = array<i32: 2, 1>} : memref<392x8xf32, #tpu.memory_space<vmem>>, vector<7x8xf32>
    %61 = arith.maximumf %57, %58 : vector<7x8xf32>
    %62 = arith.maximumf %59, %60 : vector<7x8xf32>
    %63 = arith.maximumf %61, %62 : vector<7x8xf32>
    %c0_40 = arith.constant 0 : index
    %c14_41 = arith.constant 14 : index
    %c0_42 = arith.constant 0 : index
    %64 = vector.load %arg6[%c0_40, %c14_41, %c0_42] : memref<1x98x8xf32, #tpu.memory_space<vmem>>, vector<1x7x8xf32>
    %65 = vector.shape_cast %64 : vector<1x7x8xf32> to vector<7x8xf32>
    %66 = vector.shape_cast %63 : vector<7x8xf32> to vector<1x7x8xf32>
    tpu.vector_store %arg6[%c0_40, %c14_41, %c0_42], %66 {strides = array<i32>} : memref<1x98x8xf32, #tpu.memory_space<vmem>>, vector<1x7x8xf32>,
    %c84 = arith.constant 84 : index
    %c0_43 = arith.constant 0 : index
    %67 = tpu.strided_load %arg7[%c84, %c0_43] {strides = array<i32: 2, 1>} : memref<392x8xf32, #tpu.memory_space<vmem>>, vector<7x8xf32>
    %c85 = arith.constant 85 : index
    %c0_44 = arith.constant 0 : index
    %68 = tpu.strided_load %arg7[%c85, %c0_44] {strides = array<i32: 2, 1>} : memref<392x8xf32, #tpu.memory_space<vmem>>, vector<7x8xf32>
    %c98 = arith.constant 98 : index
    %c0_45 = arith.constant 0 : index
    %69 = tpu.strided_load %arg7[%c98, %c0_45] {strides = array<i32: 2, 1>} : memref<392x8xf32, #tpu.memory_space<vmem>>, vector<7x8xf32>
    %c99 = arith.constant 99 : index
    %c0_46 = arith.constant 0 : index
    %70 = tpu.strided_load %arg7[%c99, %c0_46] {strides = array<i32: 2, 1>} : memref<392x8xf32, #tpu.memory_space<vmem>>, vector<7x8xf32>
    %71 = arith.maximumf %67, %68 : vector<7x8xf32>
    %72 = arith.maximumf %69, %70 : vector<7x8xf32>
    %73 = arith.maximumf %71, %72 : vector<7x8xf32>
    %c0_47 = arith.constant 0 : index
    %c21 = arith.constant 21 : index
    %c0_48 = arith.constant 0 : index
    %74 = vector.load %arg6[%c0_47, %c21, %c0_48] : memref<1x98x8xf32, #tpu.memory_space<vmem>>, vector<1x7x8xf32>
    %75 = vector.shape_cast %74 : vector<1x7x8xf32> to vector<7x8xf32>
    %76 = vector.shape_cast %73 : vector<7x8xf32> to vector<1x7x8xf32>
    tpu.vector_store %arg6[%c0_47, %c21, %c0_48], %76 {strides = array<i32>} : memref<1x98x8xf32, #tpu.memory_space<vmem>>, vector<1x7x8xf32>,
    %c112 = arith.constant 112 : index
    %c0_49 = arith.constant 0 : index
    %77 = tpu.strided_load %arg7[%c112, %c0_49] {strides = array<i32: 2, 1>} : memref<392x8xf32, #tpu.memory_space<vmem>>, vector<7x8xf32>
    %c113 = arith.constant 113 : index
    %c0_50 = arith.constant 0 : index
    %78 = tpu.strided_load %arg7[%c113, %c0_50] {strides = array<i32: 2, 1>} : memref<392x8xf32, #tpu.memory_space<vmem>>, vector<7x8xf32>
    %c126 = arith.constant 126 : index
    %c0_51 = arith.constant 0 : index
    %79 = tpu.strided_load %arg7[%c126, %c0_51] {strides = array<i32: 2, 1>} : memref<392x8xf32, #tpu.memory_space<vmem>>, vector<7x8xf32>
    %c127 = arith.constant 127 : index
    %c0_52 = arith.constant 0 : index
    %80 = tpu.strided_load %arg7[%c127, %c0_52] {strides = array<i32: 2, 1>} : memref<392x8xf32, #tpu.memory_space<vmem>>, vector<7x8xf32>
    %81 = arith.maximumf %77, %78 : vector<7x8xf32>
    %82 = arith.maximumf %79, %80 : vector<7x8xf32>
    %83 = arith.maximumf %81, %82 : vector<7x8xf32>
    %c0_53 = arith.constant 0 : index
    %c28_54 = arith.constant 28 : index
    %c0_55 = arith.constant 0 : index
    %84 = vector.load %arg6[%c0_53, %c28_54, %c0_55] : memref<1x98x8xf32, #tpu.memory_space<vmem>>, vector<1x7x8xf32>
    %85 = vector.shape_cast %84 : vector<1x7x8xf32> to vector<7x8xf32>
    %86 = vector.shape_cast %83 : vector<7x8xf32> to vector<1x7x8xf32>
    tpu.vector_store %arg6[%c0_53, %c28_54, %c0_55], %86 {strides = array<i32>} : memref<1x98x8xf32, #tpu.memory_space<vmem>>, vector<1x7x8xf32>,
    %c140 = arith.constant 140 : index
    %c0_56 = arith.constant 0 : index
    %87 = tpu.strided_load %arg7[%c140, %c0_56] {strides = array<i32: 2, 1>} : memref<392x8xf32, #tpu.memory_space<vmem>>, vector<7x8xf32>
    %c141 = arith.constant 141 : index
    %c0_57 = arith.constant 0 : index
    %88 = tpu.strided_load %arg7[%c141, %c0_57] {strides = array<i32: 2, 1>} : memref<392x8xf32, #tpu.memory_space<vmem>>, vector<7x8xf32>
    %c154 = arith.constant 154 : index
    %c0_58 = arith.constant 0 : index
    %89 = tpu.strided_load %arg7[%c154, %c0_58] {strides = array<i32: 2, 1>} : memref<392x8xf32, #tpu.memory_space<vmem>>, vector<7x8xf32>
    %c155 = arith.constant 155 : index
    %c0_59 = arith.constant 0 : index
    %90 = tpu.strided_load %arg7[%c155, %c0_59] {strides = array<i32: 2, 1>} : memref<392x8xf32, #tpu.memory_space<vmem>>, vector<7x8xf32>
    %91 = arith.maximumf %87, %88 : vector<7x8xf32>
    %92 = arith.maximumf %89, %90 : vector<7x8xf32>
    %93 = arith.maximumf %91, %92 : vector<7x8xf32>
    %c0_60 = arith.constant 0 : index
    %c35 = arith.constant 35 : index
    %c0_61 = arith.constant 0 : index
    %94 = vector.load %arg6[%c0_60, %c35, %c0_61] : memref<1x98x8xf32, #tpu.memory_space<vmem>>, vector<1x7x8xf32>
    %95 = vector.shape_cast %94 : vector<1x7x8xf32> to vector<7x8xf32>
    %96 = vector.shape_cast %93 : vector<7x8xf32> to vector<1x7x8xf32>
    tpu.vector_store %arg6[%c0_60, %c35, %c0_61], %96 {strides = array<i32>} : memref<1x98x8xf32, #tpu.memory_space<vmem>>, vector<1x7x8xf32>,
    %c168 = arith.constant 168 : index
    %c0_62 = arith.constant 0 : index
    %97 = tpu.strided_load %arg7[%c168, %c0_62] {strides = array<i32: 2, 1>} : memref<392x8xf32, #tpu.memory_space<vmem>>, vector<7x8xf32>
    %c169 = arith.constant 169 : index
    %c0_63 = arith.constant 0 : index
    %98 = tpu.strided_load %arg7[%c169, %c0_63] {strides = array<i32: 2, 1>} : memref<392x8xf32, #tpu.memory_space<vmem>>, vector<7x8xf32>
    %c182 = arith.constant 182 : index
    %c0_64 = arith.constant 0 : index
    %99 = tpu.strided_load %arg7[%c182, %c0_64] {strides = array<i32: 2, 1>} : memref<392x8xf32, #tpu.memory_space<vmem>>, vector<7x8xf32>
    %c183 = arith.constant 183 : index
    %c0_65 = arith.constant 0 : index
    %100 = tpu.strided_load %arg7[%c183, %c0_65] {strides = array<i32: 2, 1>} : memref<392x8xf32, #tpu.memory_space<vmem>>, vector<7x8xf32>
    %101 = arith.maximumf %97, %98 : vector<7x8xf32>
    %102 = arith.maximumf %99, %100 : vector<7x8xf32>
    %103 = arith.maximumf %101, %102 : vector<7x8xf32>
    %c0_66 = arith.constant 0 : index
    %c42_67 = arith.constant 42 : index
    %c0_68 = arith.constant 0 : index
    %104 = vector.load %arg6[%c0_66, %c42_67, %c0_68] : memref<1x98x8xf32, #tpu.memory_space<vmem>>, vector<1x7x8xf32>
    %105 = vector.shape_cast %104 : vector<1x7x8xf32> to vector<7x8xf32>
    %106 = vector.shape_cast %103 : vector<7x8xf32> to vector<1x7x8xf32>
    tpu.vector_store %arg6[%c0_66, %c42_67, %c0_68], %106 {strides = array<i32>} : memref<1x98x8xf32, #tpu.memory_space<vmem>>, vector<1x7x8xf32>,
    %c196 = arith.constant 196 : index
    %c0_69 = arith.constant 0 : index
    %107 = tpu.strided_load %arg7[%c196, %c0_69] {strides = array<i32: 2, 1>} : memref<392x8xf32, #tpu.memory_space<vmem>>, vector<7x8xf32>
    %c197 = arith.constant 197 : index
    %c0_70 = arith.constant 0 : index
    %108 = tpu.strided_load %arg7[%c197, %c0_70] {strides = array<i32: 2, 1>} : memref<392x8xf32, #tpu.memory_space<vmem>>, vector<7x8xf32>
    %c210 = arith.constant 210 : index
    %c0_71 = arith.constant 0 : index
    %109 = tpu.strided_load %arg7[%c210, %c0_71] {strides = array<i32: 2, 1>} : memref<392x8xf32, #tpu.memory_space<vmem>>, vector<7x8xf32>
    %c211 = arith.constant 211 : index
    %c0_72 = arith.constant 0 : index
    %110 = tpu.strided_load %arg7[%c211, %c0_72] {strides = array<i32: 2, 1>} : memref<392x8xf32, #tpu.memory_space<vmem>>, vector<7x8xf32>
    %111 = arith.maximumf %107, %108 : vector<7x8xf32>
    %112 = arith.maximumf %109, %110 : vector<7x8xf32>
    %113 = arith.maximumf %111, %112 : vector<7x8xf32>
    %c0_73 = arith.constant 0 : index
    %c49 = arith.constant 49 : index
    %c0_74 = arith.constant 0 : index
    %114 = vector.load %arg6[%c0_73, %c49, %c0_74] : memref<1x98x8xf32, #tpu.memory_space<vmem>>, vector<1x7x8xf32>
    %115 = vector.shape_cast %114 : vector<1x7x8xf32> to vector<7x8xf32>
    %116 = vector.shape_cast %113 : vector<7x8xf32> to vector<1x7x8xf32>
    tpu.vector_store %arg6[%c0_73, %c49, %c0_74], %116 {strides = array<i32>} : memref<1x98x8xf32, #tpu.memory_space<vmem>>, vector<1x7x8xf32>,
    %c224 = arith.constant 224 : index
    %c0_75 = arith.constant 0 : index
    %117 = tpu.strided_load %arg7[%c224, %c0_75] {strides = array<i32: 2, 1>} : memref<392x8xf32, #tpu.memory_space<vmem>>, vector<7x8xf32>
    %c225 = arith.constant 225 : index
    %c0_76 = arith.constant 0 : index
    %118 = tpu.strided_load %arg7[%c225, %c0_76] {strides = array<i32: 2, 1>} : memref<392x8xf32, #tpu.memory_space<vmem>>, vector<7x8xf32>
    %c238 = arith.constant 238 : index
    %c0_77 = arith.constant 0 : index
    %119 = tpu.strided_load %arg7[%c238, %c0_77] {strides = array<i32: 2, 1>} : memref<392x8xf32, #tpu.memory_space<vmem>>, vector<7x8xf32>
    %c239 = arith.constant 239 : index
    %c0_78 = arith.constant 0 : index
    %120 = tpu.strided_load %arg7[%c239, %c0_78] {strides = array<i32: 2, 1>} : memref<392x8xf32, #tpu.memory_space<vmem>>, vector<7x8xf32>
    %121 = arith.maximumf %117, %118 : vector<7x8xf32>
    %122 = arith.maximumf %119, %120 : vector<7x8xf32>
    %123 = arith.maximumf %121, %122 : vector<7x8xf32>
    %c0_79 = arith.constant 0 : index
    %c56_80 = arith.constant 56 : index
    %c0_81 = arith.constant 0 : index
    %124 = vector.load %arg6[%c0_79, %c56_80, %c0_81] : memref<1x98x8xf32, #tpu.memory_space<vmem>>, vector<1x7x8xf32>
    %125 = vector.shape_cast %124 : vector<1x7x8xf32> to vector<7x8xf32>
    %126 = vector.shape_cast %123 : vector<7x8xf32> to vector<1x7x8xf32>
    tpu.vector_store %arg6[%c0_79, %c56_80, %c0_81], %126 {strides = array<i32>} : memref<1x98x8xf32, #tpu.memory_space<vmem>>, vector<1x7x8xf32>,
    %c252 = arith.constant 252 : index
    %c0_82 = arith.constant 0 : index
    %127 = tpu.strided_load %arg7[%c252, %c0_82] {strides = array<i32: 2, 1>} : memref<392x8xf32, #tpu.memory_space<vmem>>, vector<7x8xf32>
    %c253 = arith.constant 253 : index
    %c0_83 = arith.constant 0 : index
    %128 = tpu.strided_load %arg7[%c253, %c0_83] {strides = array<i32: 2, 1>} : memref<392x8xf32, #tpu.memory_space<vmem>>, vector<7x8xf32>
    %c266 = arith.constant 266 : index
    %c0_84 = arith.constant 0 : index
    %129 = tpu.strided_load %arg7[%c266, %c0_84] {strides = array<i32: 2, 1>} : memref<392x8xf32, #tpu.memory_space<vmem>>, vector<7x8xf32>
    %c267 = arith.constant 267 : index
    %c0_85 = arith.constant 0 : index
    %130 = tpu.strided_load %arg7[%c267, %c0_85] {strides = array<i32: 2, 1>} : memref<392x8xf32, #tpu.memory_space<vmem>>, vector<7x8xf32>
    %131 = arith.maximumf %127, %128 : vector<7x8xf32>
    %132 = arith.maximumf %129, %130 : vector<7x8xf32>
    %133 = arith.maximumf %131, %132 : vector<7x8xf32>
    %c0_86 = arith.constant 0 : index
    %c63 = arith.constant 63 : index
    %c0_87 = arith.constant 0 : index
    %134 = vector.load %arg6[%c0_86, %c63, %c0_87] : memref<1x98x8xf32, #tpu.memory_space<vmem>>, vector<1x7x8xf32>
    %135 = vector.shape_cast %134 : vector<1x7x8xf32> to vector<7x8xf32>
    %136 = vector.shape_cast %133 : vector<7x8xf32> to vector<1x7x8xf32>
    tpu.vector_store %arg6[%c0_86, %c63, %c0_87], %136 {strides = array<i32>} : memref<1x98x8xf32, #tpu.memory_space<vmem>>, vector<1x7x8xf32>,
    %c280 = arith.constant 280 : index
    %c0_88 = arith.constant 0 : index
    %137 = tpu.strided_load %arg7[%c280, %c0_88] {strides = array<i32: 2, 1>} : memref<392x8xf32, #tpu.memory_space<vmem>>, vector<7x8xf32>
    %c281 = arith.constant 281 : index
    %c0_89 = arith.constant 0 : index
    %138 = tpu.strided_load %arg7[%c281, %c0_89] {strides = array<i32: 2, 1>} : memref<392x8xf32, #tpu.memory_space<vmem>>, vector<7x8xf32>
    %c294 = arith.constant 294 : index
    %c0_90 = arith.constant 0 : index
    %139 = tpu.strided_load %arg7[%c294, %c0_90] {strides = array<i32: 2, 1>} : memref<392x8xf32, #tpu.memory_space<vmem>>, vector<7x8xf32>
    %c295 = arith.constant 295 : index
    %c0_91 = arith.constant 0 : index
    %140 = tpu.strided_load %arg7[%c295, %c0_91] {strides = array<i32: 2, 1>} : memref<392x8xf32, #tpu.memory_space<vmem>>, vector<7x8xf32>
    %141 = arith.maximumf %137, %138 : vector<7x8xf32>
    %142 = arith.maximumf %139, %140 : vector<7x8xf32>
    %143 = arith.maximumf %141, %142 : vector<7x8xf32>
    %c0_92 = arith.constant 0 : index
    %c70_93 = arith.constant 70 : index
    %c0_94 = arith.constant 0 : index
    %144 = vector.load %arg6[%c0_92, %c70_93, %c0_94] : memref<1x98x8xf32, #tpu.memory_space<vmem>>, vector<1x7x8xf32>
    %145 = vector.shape_cast %144 : vector<1x7x8xf32> to vector<7x8xf32>
    %146 = vector.shape_cast %143 : vector<7x8xf32> to vector<1x7x8xf32>
    tpu.vector_store %arg6[%c0_92, %c70_93, %c0_94], %146 {strides = array<i32>} : memref<1x98x8xf32, #tpu.memory_space<vmem>>, vector<1x7x8xf32>,
    %c308 = arith.constant 308 : index
    %c0_95 = arith.constant 0 : index
    %147 = tpu.strided_load %arg7[%c308, %c0_95] {strides = array<i32: 2, 1>} : memref<392x8xf32, #tpu.memory_space<vmem>>, vector<7x8xf32>
    %c309 = arith.constant 309 : index
    %c0_96 = arith.constant 0 : index
    %148 = tpu.strided_load %arg7[%c309, %c0_96] {strides = array<i32: 2, 1>} : memref<392x8xf32, #tpu.memory_space<vmem>>, vector<7x8xf32>
    %c322 = arith.constant 322 : index
    %c0_97 = arith.constant 0 : index
    %149 = tpu.strided_load %arg7[%c322, %c0_97] {strides = array<i32: 2, 1>} : memref<392x8xf32, #tpu.memory_space<vmem>>, vector<7x8xf32>
    %c323 = arith.constant 323 : index
    %c0_98 = arith.constant 0 : index
    %150 = tpu.strided_load %arg7[%c323, %c0_98] {strides = array<i32: 2, 1>} : memref<392x8xf32, #tpu.memory_space<vmem>>, vector<7x8xf32>
    %151 = arith.maximumf %147, %148 : vector<7x8xf32>
    %152 = arith.maximumf %149, %150 : vector<7x8xf32>
    %153 = arith.maximumf %151, %152 : vector<7x8xf32>
    %c0_99 = arith.constant 0 : index
    %c77 = arith.constant 77 : index
    %c0_100 = arith.constant 0 : index
    %154 = vector.load %arg6[%c0_99, %c77, %c0_100] : memref<1x98x8xf32, #tpu.memory_space<vmem>>, vector<1x7x8xf32>
    %155 = vector.shape_cast %154 : vector<1x7x8xf32> to vector<7x8xf32>
    %156 = vector.shape_cast %153 : vector<7x8xf32> to vector<1x7x8xf32>
    tpu.vector_store %arg6[%c0_99, %c77, %c0_100], %156 {strides = array<i32>} : memref<1x98x8xf32, #tpu.memory_space<vmem>>, vector<1x7x8xf32>,
    %c336 = arith.constant 336 : index
    %c0_101 = arith.constant 0 : index
    %157 = tpu.strided_load %arg7[%c336, %c0_101] {strides = array<i32: 2, 1>} : memref<392x8xf32, #tpu.memory_space<vmem>>, vector<7x8xf32>
    %c337 = arith.constant 337 : index
    %c0_102 = arith.constant 0 : index
    %158 = tpu.strided_load %arg7[%c337, %c0_102] {strides = array<i32: 2, 1>} : memref<392x8xf32, #tpu.memory_space<vmem>>, vector<7x8xf32>
    %c350 = arith.constant 350 : index
    %c0_103 = arith.constant 0 : index
    %159 = tpu.strided_load %arg7[%c350, %c0_103] {strides = array<i32: 2, 1>} : memref<392x8xf32, #tpu.memory_space<vmem>>, vector<7x8xf32>
    %c351 = arith.constant 351 : index
    %c0_104 = arith.constant 0 : index
    %160 = tpu.strided_load %arg7[%c351, %c0_104] {strides = array<i32: 2, 1>} : memref<392x8xf32, #tpu.memory_space<vmem>>, vector<7x8xf32>
    %161 = arith.maximumf %157, %158 : vector<7x8xf32>
    %162 = arith.maximumf %159, %160 : vector<7x8xf32>
    %163 = arith.maximumf %161, %162 : vector<7x8xf32>
    %c0_105 = arith.constant 0 : index
    %c84_106 = arith.constant 84 : index
    %c0_107 = arith.constant 0 : index
    %164 = vector.load %arg6[%c0_105, %c84_106, %c0_107] : memref<1x98x8xf32, #tpu.memory_space<vmem>>, vector<1x7x8xf32>
    %165 = vector.shape_cast %164 : vector<1x7x8xf32> to vector<7x8xf32>
    %166 = vector.shape_cast %163 : vector<7x8xf32> to vector<1x7x8xf32>
    tpu.vector_store %arg6[%c0_105, %c84_106, %c0_107], %166 {strides = array<i32>} : memref<1x98x8xf32, #tpu.memory_space<vmem>>, vector<1x7x8xf32>,
    %c364 = arith.constant 364 : index
    %c0_108 = arith.constant 0 : index
    %167 = tpu.strided_load %arg7[%c364, %c0_108] {strides = array<i32: 2, 1>} : memref<392x8xf32, #tpu.memory_space<vmem>>, vector<7x8xf32>
    %c365 = arith.constant 365 : index
    %c0_109 = arith.constant 0 : index
    %168 = tpu.strided_load %arg7[%c365, %c0_109] {strides = array<i32: 2, 1>} : memref<392x8xf32, #tpu.memory_space<vmem>>, vector<7x8xf32>
    %c378 = arith.constant 378 : index
    %c0_110 = arith.constant 0 : index
    %169 = tpu.strided_load %arg7[%c378, %c0_110] {strides = array<i32: 2, 1>} : memref<392x8xf32, #tpu.memory_space<vmem>>, vector<7x8xf32>
    %c379 = arith.constant 379 : index
    %c0_111 = arith.constant 0 : index
    %170 = tpu.strided_load %arg7[%c379, %c0_111] {strides = array<i32: 2, 1>} : memref<392x8xf32, #tpu.memory_space<vmem>>, vector<7x8xf32>
    %171 = arith.maximumf %167, %168 : vector<7x8xf32>
    %172 = arith.maximumf %169, %170 : vector<7x8xf32>
    %173 = arith.maximumf %171, %172 : vector<7x8xf32>
    %c0_112 = arith.constant 0 : index
    %c91 = arith.constant 91 : index
    %c0_113 = arith.constant 0 : index
    %174 = vector.load %arg6[%c0_112, %c91, %c0_113] : memref<1x98x8xf32, #tpu.memory_space<vmem>>, vector<1x7x8xf32>
    %175 = vector.shape_cast %174 : vector<1x7x8xf32> to vector<7x8xf32>
    %176 = vector.shape_cast %173 : vector<7x8xf32> to vector<1x7x8xf32>
    tpu.vector_store %arg6[%c0_112, %c91, %c0_113], %176 {strides = array<i32>} : memref<1x98x8xf32, #tpu.memory_space<vmem>>, vector<1x7x8xf32>,
    return
  }
  func.func @transform_0(%arg0: i32) -> (i32, i32, i32) {
    %c0_i32 = arith.constant 0 : i32
    %c0_i32_0 = arith.constant 0 : i32
    %c0_i32_1 = arith.constant 0 : i32
    return %arg0, %c0_i32, %c0_i32_0 : i32, i32, i32
  }
  func.func @transform_1(%arg0: i32) -> (i32, i32, i32) {
    %c0_i32 = arith.constant 0 : i32
    %c0_i32_0 = arith.constant 0 : i32
    %c0_i32_1 = arith.constant 0 : i32
    return %arg0, %c0_i32, %c0_i32_0 : i32, i32, i32
  }
  func.func @transform_2(%arg0: i32) -> (i32, i32, i32) {
    %c0_i32 = arith.constant 0 : i32
    %c0_i32_0 = arith.constant 0 : i32
    %c0_i32_1 = arith.constant 0 : i32
    return %arg0, %c0_i32, %c0_i32_0 : i32, i32, i32
  }
  func.func @transform_3(%arg0: i32) -> (i32, i32, i32) {
    %c0_i32 = arith.constant 0 : i32
    %c0_i32_0 = arith.constant 0 : i32
    %c0_i32_1 = arith.constant 0 : i32
    return %arg0, %c0_i32, %c0_i32_0 : i32, i32, i32
  }
  func.func @transform_4(%arg0: i32) -> (i32, i32, i32) {
    %c0_i32 = arith.constant 0 : i32
    %c0_i32_0 = arith.constant 0 : i32
    %c0_i32_1 = arith.constant 0 : i32
    return %arg0, %c0_i32, %c0_i32_0 : i32, i32, i32
  }
  func.func @transform_5(%arg0: i32) -> (i32, i32, i32) {
    %c0_i32 = arith.constant 0 : i32
    %c0_i32_0 = arith.constant 0 : i32
    %c0_i32_1 = arith.constant 0 : i32
    return %arg0, %c0_i32, %c0_i32_0 : i32, i32, i32
  }
}

</mosaic_0001>

<llo_original>
// kernel: squeeze.2
$region0: #{squeeze.2}
  %s0 = inlined_call_operand.vmem [shape: f32[1,98,8], index: 0, kind: input, shape index: {}]
  %s1 = inlined_call_operand.vmem [shape: f32[2,7,7,8], index: 1, kind: output, shape index: {}]
  %v2 = vld [vmem:[%s0] sm:$0xff]
  %vm3 = vcmask 56320
  %4 = vst.msk [vmem:[%s1] ss:$16 sm:$0x3] %vm3, %v2
  %5 = vst.msk [vmem:[%s1] ss:$16 sm:$0xc] %vm3, %v2
  %6 = vst.msk [vmem:[%s1] ss:$16 sm:$0x30] %vm3, %v2
  %7 = vst.msk [vmem:[%s1] ss:$16 sm:$0xc0] %vm3, %v2
  %v8 = vld [vmem:[%s0] sm:$0xff]
  %9 = vrot.lane.b32.xlu0 %v8, 121
  %v10 = vpop.permute.xlu0 %9
  %vm11 = vcmask 56320
  %s12 = scalar_lea.vmem %s1, 1
  %13 = vst.msk [vmem:[%s12] ss:$16 sm:$0x3] %vm11, %v10
  %s14 = scalar_lea.vmem %s1, 1
  %15 = vst.msk [vmem:[%s14] ss:$16 sm:$0xc] %vm11, %v10
  %s16 = scalar_lea.vmem %s1, 1
  %17 = vst.msk [vmem:[%s16] ss:$16 sm:$0x30] %vm11, %v10
  %s18 = scalar_lea.vmem %s1, 1
  %19 = vst.msk [vmem:[%s18] ss:$16 sm:$0xc0] %vm11, %v10
  %v20 = vld [vmem:[%s0] sm:$0xff]
  %21 = vrot.lane.b32.xlu0 %v20, 114
  %v22 = vpop.permute.xlu0 %21
  %vm23 = vcmask 56320
  %s24 = scalar_lea.vmem %s1, 2
  %25 = vst.msk [vmem:[%s24] ss:$16 sm:$0x3] %vm23, %v22
  %s26 = scalar_lea.vmem %s1, 2
  %27 = vst.msk [vmem:[%s26] ss:$16 sm:$0xc] %vm23, %v22
  %s28 = scalar_lea.vmem %s1, 2
  %29 = vst.msk [vmem:[%s28] ss:$16 sm:$0x30] %vm23, %v22
  %s30 = scalar_lea.vmem %s1, 2
  %31 = vst.msk [vmem:[%s30] ss:$16 sm:$0xc0] %vm23, %v22
  %v32 = vld [vmem:[%s0] sm:$0xff]
  %33 = vrot.lane.b32.xlu0 %v32, 107
  %v34 = vpop.permute.xlu0 %33
  %vm35 = vcmask 56320
  %s36 = scalar_lea.vmem %s1, 3
  %37 = vst.msk [vmem:[%s36] ss:$16 sm:$0x3] %vm35, %v34
  %s38 = scalar_lea.vmem %s1, 3
  %39 = vst.msk [vmem:[%s38] ss:$16 sm:$0xc] %vm35, %v34
  %s40 = scalar_lea.vmem %s1, 3
  %41 = vst.msk [vmem:[%s40] ss:$16 sm:$0x30] %vm35, %v34
  %s42 = scalar_lea.vmem %s1, 3
  %43 = vst.msk [vmem:[%s42] ss:$16 sm:$0xc0] %vm35, %v34
  %v44 = vld [vmem:[%s0] sm:$0xff]
  %45 = vrot.lane.b32.xlu0 %v44, 100
  %v46 = vpop.permute.xlu0 %45
  %vm47 = vcmask 56320
  %s48 = scalar_lea.vmem %s1, 4
  %49 = vst.msk [vmem:[%s48] ss:$16 sm:$0x3] %vm47, %v46
  %s50 = scalar_lea.vmem %s1, 4
  %51 = vst.msk [vmem:[%s50] ss:$16 sm:$0xc] %vm47, %v46
  %s52 = scalar_lea.vmem %s1, 4
  %53 = vst.msk [vmem:[%s52] ss:$16 sm:$0x30] %vm47, %v46
  %s54 = scalar_lea.vmem %s1, 4
  %55 = vst.msk [vmem:[%s54] ss:$16 sm:$0xc0] %vm47, %v46
  %v56 = vld [vmem:[%s0] sm:$0xff]
  %57 = vrot.lane.b32.xlu0 %v56, 93
  %v58 = vpop.permute.xlu0 %57
  %vm59 = vcmask 56320
  %s60 = scalar_lea.vmem %s1, 5
  %61 = vst.msk [vmem:[%s60] ss:$16 sm:$0x3] %vm59, %v58
  %s62 = scalar_lea.vmem %s1, 5
  %63 = vst.msk [vmem:[%s62] ss:$16 sm:$0xc] %vm59, %v58
  %s64 = scalar_lea.vmem %s1, 5
  %65 = vst.msk [vmem:[%s64] ss:$16 sm:$0x30] %vm59, %v58
  %s66 = scalar_lea.vmem %s1, 5
  %67 = vst.msk [vmem:[%s66] ss:$16 sm:$0xc0] %vm59, %v58
  %v68 = vld [vmem:[%s0] sm:$0xff]
  %69 = vrot.lane.b32.xlu0 %v68, 86
  %v70 = vpop.permute.xlu0 %69
  %vm71 = vcmask 56320
  %s72 = scalar_lea.vmem %s1, 6
  %73 = vst.msk [vmem:[%s72] ss:$16 sm:$0x3] %vm71, %v70
  %s74 = scalar_lea.vmem %s1, 6
  %75 = vst.msk [vmem:[%s74] ss:$16 sm:$0xc] %vm71, %v70
  %s76 = scalar_lea.vmem %s1, 6
  %77 = vst.msk [vmem:[%s76] ss:$16 sm:$0x30] %vm71, %v70
  %s78 = scalar_lea.vmem %s1, 6
  %79 = vst.msk [vmem:[%s78] ss:$16 sm:$0xc0] %vm71, %v70
  %v80 = vld [vmem:[%s0] sm:$0xff]
  %81 = vrot.lane.b32.xlu0 %v80, 79
  %v82 = vpop.permute.xlu0 %81
  %vm83 = vcmask 56320
  %s84 = scalar_lea.vmem %s1, 8
  %85 = vst.msk [vmem:[%s84] ss:$16 sm:$0x3] %vm83, %v82
  %s86 = scalar_lea.vmem %s1, 8
  %87 = vst.msk [vmem:[%s86] ss:$16 sm:$0xc] %vm83, %v82
  %s88 = scalar_lea.vmem %s1, 8
  %89 = vst.msk [vmem:[%s88] ss:$16 sm:$0x30] %vm83, %v82
  %s90 = scalar_lea.vmem %s1, 8
  %91 = vst.msk [vmem:[%s90] ss:$16 sm:$0xc0] %vm83, %v82
  %v92 = vld [vmem:[%s0] sm:$0xff]
  %93 = vrot.lane.b32.xlu0 %v92, 72
  %v94 = vpop.permute.xlu0 %93
  %vm95 = vcmask 56320
  %s96 = scalar_lea.vmem %s1, 9
  %97 = vst.msk [vmem:[%s96] ss:$16 sm:$0x3] %vm95, %v94
  %s98 = scalar_lea.vmem %s1, 9
  %99 = vst.msk [vmem:[%s98] ss:$16 sm:$0xc] %vm95, %v94
  %s100 = scalar_lea.vmem %s1, 9
  %101 = vst.msk [vmem:[%s100] ss:$16 sm:$0x30] %vm95, %v94
  %s102 = scalar_lea.vmem %s1, 9
  %103 = vst.msk [vmem:[%s102] ss:$16 sm:$0xc0] %vm95, %v94
  %v104 = vld [vmem:[%s0] sm:$0xff]
  %105 = vrot.lane.b32.xlu0 %v104, 65
  %v106 = vpop.permute.xlu0 %105
  %vm107 = vcmask 56320
  %s108 = scalar_lea.vmem %s1, 10
  %109 = vst.msk [vmem:[%s108] ss:$16 sm:$0x3] %vm107, %v106
  %s110 = scalar_lea.vmem %s1, 10
  %111 = vst.msk [vmem:[%s110] ss:$16 sm:$0xc] %vm107, %v106
  %s112 = scalar_lea.vmem %s1, 10
  %113 = vst.msk [vmem:[%s112] ss:$16 sm:$0x30] %vm107, %v106
  %s114 = scalar_lea.vmem %s1, 10
  %115 = vst.msk [vmem:[%s114] ss:$16 sm:$0xc0] %vm107, %v106
  %v116 = vld [vmem:[%s0] sm:$0xff]
  %117 = vrot.lane.b32.xlu0 %v116, 58
  %v118 = vpop.permute.xlu0 %117
  %vm119 = vcmask 56320
  %s120 = scalar_lea.vmem %s1, 11
  %121 = vst.msk [vmem:[%s120] ss:$16 sm:$0x3] %vm119, %v118
  %s122 = scalar_lea.vmem %s1, 11
  %123 = vst.msk [vmem:[%s122] ss:$16 sm:$0xc] %vm119, %v118
  %s124 = scalar_lea.vmem %s1, 11
  %125 = vst.msk [vmem:[%s124] ss:$16 sm:$0x30] %vm119, %v118
  %s126 = scalar_lea.vmem %s1, 11
  %127 = vst.msk [vmem:[%s126] ss:$16 sm:$0xc0] %vm119, %v118
  %v128 = vld [vmem:[%s0] sm:$0xff]
  %129 = vrot.lane.b32.xlu0 %v128, 51
  %v130 = vpop.permute.xlu0 %129
  %vm131 = vcmask 56320
  %s132 = scalar_lea.vmem %s1, 12
  %133 = vst.msk [vmem:[%s132] ss:$16 sm:$0x3] %vm131, %v130
  %s134 = scalar_lea.vmem %s1, 12
  %135 = vst.msk [vmem:[%s134] ss:$16 sm:$0xc] %vm131, %v130
  %s136 = scalar_lea.vmem %s1, 12
  %137 = vst.msk [vmem:[%s136] ss:$16 sm:$0x30] %vm131, %v130
  %s138 = scalar_lea.vmem %s1, 12
  %139 = vst.msk [vmem:[%s138] ss:$16 sm:$0xc0] %vm131, %v130
  %v140 = vld [vmem:[%s0] sm:$0xff]
  %141 = vrot.lane.b32.xlu0 %v140, 44
  %v142 = vpop.permute.xlu0 %141
  %vm143 = vcmask 56320
  %s144 = scalar_lea.vmem %s1, 13
  %145 = vst.msk [vmem:[%s144] ss:$16 sm:$0x3] %vm143, %v142
  %s146 = scalar_lea.vmem %s1, 13
  %147 = vst.msk [vmem:[%s146] ss:$16 sm:$0xc] %vm143, %v142
  %s148 = scalar_lea.vmem %s1, 13
  %149 = vst.msk [vmem:[%s148] ss:$16 sm:$0x30] %vm143, %v142
  %s150 = scalar_lea.vmem %s1, 13
  %151 = vst.msk [vmem:[%s150] ss:$16 sm:$0xc0] %vm143, %v142
  %v152 = vld [vmem:[%s0] sm:$0xff]
  %153 = vrot.lane.b32.xlu0 %v152, 37
  %v154 = vpop.permute.xlu0 %153
  %vm155 = vcmask 56320
  %s156 = scalar_lea.vmem %s1, 14
  %157 = vst.msk [vmem:[%s156] ss:$16 sm:$0x3] %vm155, %v154
  %s158 = scalar_lea.vmem %s1, 14
  %159 = vst.msk [vmem:[%s158] ss:$16 sm:$0xc] %vm155, %v154
  %s160 = scalar_lea.vmem %s1, 14
  %161 = vst.msk [vmem:[%s160] ss:$16 sm:$0x30] %vm155, %v154
  %s162 = scalar_lea.vmem %s1, 14
  %163 = vst.msk [vmem:[%s162] ss:$16 sm:$0xc0] %vm155, %v154

// kernel: parallel_convolution_forward.1
$region0: #{parallel_convolution_forward.1}
  #allocation0 [shape = 'u32[]', space=smem, size = 0x4, offset = 0x4, fixed_abs, tag = 'smem constant byte address 0x4 - core index']
  #allocation1 [shape = 'u32[72,128]{1,0:T(1,128)}', space=vmem, size = 0x9000, scoped, tag = 'internal scratch']
  #allocation2 [shape = 'f32[392,8]{1,0:T(8,128)}', space=vmem, size = 0x31000, scoped, tag = 'scratch operand']
  %s0 = inlined_call_operand.vmem [shape: f32[2,392,36], index: 0, kind: input, shape index: {}]
  %s1 = inlined_call_operand.vmem [shape: f32[2,36,8], index: 1, kind: input, shape index: {}]
  %s2 = inlined_call_operand.vmem [shape: f32[2,1,8], index: 2, kind: input, shape index: {}]
  %s3 = inlined_call_operand.vmem [shape: f32[2,1,8], index: 3, kind: input, shape index: {}]
  %s4 = inlined_call_operand.vmem [shape: f32[2,1,8], index: 4, kind: input, shape index: {}]
  %s5 = inlined_call_operand.vmem [shape: f32[2,98,8], index: 5, kind: output, shape index: {}]
  %s6 = sld [smem:[#allocation0]]
  $region53: #{parallel_convolution_forward.1} parent=0
    _
  %s8 = ssub.s32 1, %s6
  %s9 = scalar_select 0, %s8, %s6
  loop: start=0, step=1, limit=4
  $region2: #{parallel_convolution_forward.1} parent=0 // loop_pre_header
    _
  $region3: #{parallel_convolution_forward.1} parent=0 // loop_header
    %s11 = sphi 0, %s15
    %p12 = scmp.ge.s32.totalorder %s11, 4
    %s21 = sphi 0, %s23
    %s24 = sphi 0, %s21
    %s25 = sphi 0, %s24
    %s41 = sphi 0, %s25
    %s47 = sphi 0, %s49
    %s50 = sphi 0, %s47
    %s51 = sphi 0, %s50
    %s67 = sphi 0, %s51
    %s73 = sphi 0, %s75
    %s76 = sphi 0, %s73
    %s77 = sphi 0, %s76
    %s93 = sphi 0, %s77
    %s99 = sphi 0, %s101
    %s102 = sphi 0, %s99
    %s103 = sphi 0, %s102
    %s119 = sphi 0, %s103
    %s125 = sphi 0, %s127
    %s128 = sphi 0, %s125
    %s129 = sphi 0, %s128
    %s145 = sphi 0, %s129
    %s151 = sphi 0, %s153
    %s154 = sphi 0, %s151
    %s155 = sphi 0, %s154
    %s171 = sphi 0, %s155
  $region4: #{parallel_convolution_forward.1} parent=0 // loop_header_branch
    %14 = sbr.rel (%p12) target = $region8
  $region5: #{parallel_convolution_forward.1} parent=0 // loop_body
    %s16 = ssub.s32 %s11, 1
    %s17 = ssub.s32 %s11, 2
    %s18 = sadd.s32 %s11, 1
    %s19 = ssub.s32 %s11, %s18
    %p20 = scmp.eq.s32.totalorder %s19, 0
    %s22 = sadd.s32 %s21, 1
    %s23 = scalar_select %p20, %s21, %s22
    %p26 = pneg %p20
    %p27 = scmp.eq.s32.totalorder %s11, 1
    %p28 = por %p26, %p27
    %p29 = scmp.ne.s32.totalorder %s21, %s24
    %p30 = scmp.eq.s32.totalorder %s11, 0
    %p31 = por %p29, %p30
    %p32 = scmp.ne.s32.totalorder %s21, %s24
    %p33 = scmp.eq.s32.totalorder %s16, 1
    %p34 = por %p32, %p33
    %p35 = scmp.ne.s32.totalorder %s24, %s25
    %p36 = scmp.eq.s32.totalorder %s16, 0
    %p37 = por %p35, %p36
    %p38 = scmp.ne.s32.totalorder %s24, %s25
    %p39 = scmp.eq.s32.totalorder %s17, 1
    %p40 = por %p38, %p39
    %p42 = scmp.ne.s32.totalorder %s25, %s41
    %p43 = scmp.eq.s32.totalorder %s17, 0
    %p44 = por %p42, %p43
    %s45 = ssub.s32 %s11, %s18
    %p46 = scmp.eq.s32.totalorder %s45, 0
    %s48 = sadd.s32 %s47, 1
    %s49 = scalar_select %p46, %s47, %s48
    %p52 = pneg %p46
    %p53 = scmp.eq.s32.totalorder %s11, 1
    %p54 = por %p52, %p53
    %p55 = scmp.ne.s32.totalorder %s47, %s50
    %p56 = scmp.eq.s32.totalorder %s11, 0
    %p57 = por %p55, %p56
    %p58 = scmp.ne.s32.totalorder %s47, %s50
    %p59 = scmp.eq.s32.totalorder %s16, 1
    %p60 = por %p58, %p59
    %p61 = scmp.ne.s32.totalorder %s50, %s51
    %p62 = scmp.eq.s32.totalorder %s16, 0
    %p63 = por %p61, %p62
    %p64 = scmp.ne.s32.totalorder %s50, %s51
    %p65 = scmp.eq.s32.totalorder %s17, 1
    %p66 = por %p64, %p65
    %p68 = scmp.ne.s32.totalorder %s51, %s67
    %p69 = scmp.eq.s32.totalorder %s17, 0
    %p70 = por %p68, %p69
    %s71 = ssub.s32 %s11, %s18
    %p72 = scmp.eq.s32.totalorder %s71, 0
    %s74 = sadd.s32 %s73, 1
    %s75 = scalar_select %p72, %s73, %s74
    %p78 = pneg %p72
    %p79 = scmp.eq.s32.totalorder %s11, 1
    %p80 = por %p78, %p79
    %p81 = scmp.ne.s32.totalorder %s73, %s76
    %p82 = scmp.eq.s32.totalorder %s11, 0
    %p83 = por %p81, %p82
    %p84 = scmp.ne.s32.totalorder %s73, %s76
    %p85 = scmp.eq.s32.totalorder %s16, 1
    %p86 = por %p84, %p85
    %p87 = scmp.ne.s32.totalorder %s76, %s77
    %p88 = scmp.eq.s32.totalorder %s16, 0
    %p89 = por %p87, %p88
    %p90 = scmp.ne.s32.totalorder %s76, %s77
    %p91 = scmp.eq.s32.totalorder %s17, 1
    %p92 = por %p90, %p91
    %p94 = scmp.ne.s32.totalorder %s77, %s93
    %p95 = scmp.eq.s32.totalorder %s17, 0
    %p96 = por %p94, %p95
    %s97 = ssub.s32 %s11, %s18
    %p98 = scmp.eq.s32.totalorder %s97, 0
    %s100 = sadd.s32 %s99, 1
    %s101 = scalar_select %p98, %s99, %s100
    %p104 = pneg %p98
    %p105 = scmp.eq.s32.totalorder %s11, 1
    %p106 = por %p104, %p105
    %p107 = scmp.ne.s32.totalorder %s99, %s102
    %p108 = scmp.eq.s32.totalorder %s11, 0
    %p109 = por %p107, %p108
    %p110 = scmp.ne.s32.totalorder %s99, %s102
    %p111 = scmp.eq.s32.totalorder %s16, 1
    %p112 = por %p110, %p111
    %p113 = scmp.ne.s32.totalorder %s102, %s103
    %p114 = scmp.eq.s32.totalorder %s16, 0
    %p115 = por %p113, %p114
    %p116 = scmp.ne.s32.totalorder %s102, %s103
    %p117 = scmp.eq.s32.totalorder %s17, 1
    %p118 = por %p116, %p117
    %p120 = scmp.ne.s32.totalorder %s103, %s119
    %p121 = scmp.eq.s32.totalorder %s17, 0
    %p122 = por %p120, %p121
    %s123 = ssub.s32 %s11, %s18
    %p124 = scmp.eq.s32.totalorder %s123, 0
    %s126 = sadd.s32 %s125, 1
    %s127 = scalar_select %p124, %s125, %s126
    %p130 = pneg %p124
    %p131 = scmp.eq.s32.totalorder %s11, 1
    %p132 = por %p130, %p131
    %p133 = scmp.ne.s32.totalorder %s125, %s128
    %p134 = scmp.eq.s32.totalorder %s11, 0
    %p135 = por %p133, %p134
    %p136 = scmp.ne.s32.totalorder %s125, %s128
    %p137 = scmp.eq.s32.totalorder %s16, 1
    %p138 = por %p136, %p137
    %p139 = scmp.ne.s32.totalorder %s128, %s129
    %p140 = scmp.eq.s32.totalorder %s16, 0
    %p141 = por %p139, %p140
    %p142 = scmp.ne.s32.totalorder %s128, %s129
    %p143 = scmp.eq.s32.totalorder %s17, 1
    %p144 = por %p142, %p143
    %p146 = scmp.ne.s32.totalorder %s129, %s145
    %p147 = scmp.eq.s32.totalorder %s17, 0
    %p148 = por %p146, %p147
    %s149 = ssub.s32 %s11, %s18
    %p150 = scmp.eq.s32.totalorder %s149, 0
    %s152 = sadd.s32 %s151, 1
    %s153 = scalar_select %p150, %s151, %s152
    %p156 = pneg %p150
    %p157 = scmp.eq.s32.totalorder %s11, 1
    %p158 = por %p156, %p157
    %p159 = scmp.ne.s32.totalorder %s151, %s154
    %p160 = scmp.eq.s32.totalorder %s11, 0
    %p161 = por %p159, %p160
    %p162 = scmp.ne.s32.totalorder %s151, %s154
    %p163 = scmp.eq.s32.totalorder %s16, 1
    %p164 = por %p162, %p163
    %p165 = scmp.ne.s32.totalorder %s154, %s155
    %p166 = scmp.eq.s32.totalorder %s16, 0
    %p167 = por %p165, %p166
    %p168 = scmp.ne.s32.totalorder %s154, %s155
    %p169 = scmp.eq.s32.totalorder %s17, 1
    %p170 = por %p168, %p169
    %p172 = scmp.ne.s32.totalorder %s155, %s171
    %p173 = scmp.eq.s32.totalorder %s17, 0
    %p174 = por %p172, %p173
    %p175 = scmp.le.s32.totalorder 1, %s11
    %p176 = scmp.lt.s32.totalorder %s11, 3
    %p177 = pnand %p175, %p176
    %p178 = pneg %p177
    // Predicated region
    $region9: #{parallel_convolution_forward.1} parent=5 // pred_check
      _
    $region10: #{parallel_convolution_forward.1} parent=5 // pred_check_branch
      %180 = sbr.rel (%p177) target = $region12
    $region11: #{parallel_convolution_forward.1} parent=5 // pred_region
      %s181 = ssub.s32 %s11, 1
    $region12: #{parallel_convolution_forward.1} parent=5 // pred_fallthru
      _
    %p182 = scmp.lt.s32.totalorder %s11, 2
    // Predicated region
    $region13: #{parallel_convolution_forward.1} parent=5 // pred_check
      %p183 = pneg %p182
    $region14: #{parallel_convolution_forward.1} parent=5 // pred_check_branch
      %185 = sbr.rel (%p183) target = $region16
    $region15: #{parallel_convolution_forward.1} parent=5 // pred_region
      // Predicated region
      $region17: #{parallel_convolution_forward.1} parent=15 // pred_check
        %p186 = pneg %p31
      $region18: #{parallel_convolution_forward.1} parent=15 // pred_check_branch
        %188 = sbr.rel (%p186) target = $region20
      $region19: #{parallel_convolution_forward.1} parent=15 // pred_region
        %p189 = scmp.lt.s32.totalorder %s11, 1
        %s190 = scalar_select %p189, %s11, 1
        %s191 = smul.addr %s190, 49
        %s192 = smul.addr %s191, 8
        %s193 = scalar_lea.vmem %s0, %s192
      $region20: #{parallel_convolution_forward.1} parent=15 // pred_fallthru
        _
      // Predicated region
      $region21: #{parallel_convolution_forward.1} parent=15 // pred_check
        %p194 = pneg %p57
      $region22: #{parallel_convolution_forward.1} parent=15 // pred_check_branch
        %196 = sbr.rel (%p194) target = $region24
      $region23: #{parallel_convolution_forward.1} parent=15 // pred_region
        %p197 = scmp.lt.s32.totalorder %s11, 1
        %s198 = scalar_select %p197, %s11, 1
        %s199 = smul.addr %s198, 5
        %s200 = smul.addr %s199, 8
        %s201 = scalar_lea.vmem %s1, %s200
      $region24: #{parallel_convolution_forward.1} parent=15 // pred_fallthru
        _
      // Predicated region
      $region25: #{parallel_convolution_forward.1} parent=15 // pred_check
        %p202 = pneg %p83
      $region26: #{parallel_convolution_forward.1} parent=15 // pred_check_branch
        %204 = sbr.rel (%p202) target = $region28
      $region27: #{parallel_convolution_forward.1} parent=15 // pred_region
        %p205 = scmp.lt.s32.totalorder %s11, 1
        %s206 = scalar_select %p205, %s11, 1
        %s207 = scalar_lea.vmem %s2, %s206
      $region28: #{parallel_convolution_forward.1} parent=15 // pred_fallthru
        _
      // Predicated region
      $region29: #{parallel_convolution_forward.1} parent=15 // pred_check
        %p208 = pneg %p109
      $region30: #{parallel_convolution_forward.1} parent=15 // pred_check_branch
        %210 = sbr.rel (%p208) target = $region32
      $region31: #{parallel_convolution_forward.1} parent=15 // pred_region
        %p211 = scmp.lt.s32.totalorder %s11, 1
        %s212 = scalar_select %p211, %s11, 1
        %s213 = scalar_lea.vmem %s3, %s212
      $region32: #{parallel_convolution_forward.1} parent=15 // pred_fallthru
        _
      // Predicated region
      $region33: #{parallel_convolution_forward.1} parent=15 // pred_check
        %p214 = pneg %p135
      $region34: #{parallel_convolution_forward.1} parent=15 // pred_check_branch
        %216 = sbr.rel (%p214) target = $region36
      $region35: #{parallel_convolution_forward.1} parent=15 // pred_region
        %p217 = scmp.lt.s32.totalorder %s11, 1
        %s218 = scalar_select %p217, %s11, 1
        %s219 = scalar_lea.vmem %s4, %s218
      $region36: #{parallel_convolution_forward.1} parent=15 // pred_fallthru
        _
    $region16: #{parallel_convolution_forward.1} parent=5 // pred_fallthru
      _
    %p220 = scmp.le.s32.totalorder 1, %s11
    %p221 = scmp.lt.s32.totalorder %s11, 3
    %p222 = pnand %p220, %p221
    %p223 = pneg %p222
    // Predicated region
    $region37: #{parallel_convolution_forward.1} parent=5 // pred_check
      _
    $region38: #{parallel_convolution_forward.1} parent=5 // pred_check_branch
      %225 = sbr.rel (%p222) target = $region40
    $region39: #{parallel_convolution_forward.1} parent=5 // pred_region
      %s226 = ssub.s32 %s11, 1
      %p227 = scmp.lt.s32.totalorder %s16, 1
      %s228 = scalar_select %p227, %s16, 1
      %s229 = smul.addr %s228, 49
      %s230 = smul.addr %s229, 8
      %s231 = scalar_lea.vmem %s0, %s230
      %p232 = pneg %p37
      %p233 = pneg %p34
      %p234 = scmp.lt.s32.totalorder %s16, 1
      %s235 = scalar_select %p234, %s16, 1
      %s236 = smul.addr %s235, 5
      %s237 = smul.addr %s236, 8
      %s238 = scalar_lea.vmem %s1, %s237
      %p239 = pneg %p63
      %p240 = pneg %p60
      %p241 = scmp.lt.s32.totalorder %s16, 1
      %s242 = scalar_select %p241, %s16, 1
      %s243 = scalar_lea.vmem %s2, %s242
      %p244 = pneg %p89
      %p245 = pneg %p86
      %p246 = scmp.lt.s32.totalorder %s16, 1
      %s247 = scalar_select %p246, %s16, 1
      %s248 = scalar_lea.vmem %s3, %s247
      %p249 = pneg %p115
      %p250 = pneg %p112
      %p251 = scmp.lt.s32.totalorder %s16, 1
      %s252 = scalar_select %p251, %s16, 1
      %s253 = scalar_lea.vmem %s4, %s252
      %p254 = pneg %p141
      %p255 = pneg %p138
      %p256 = pneg %p167
      %p257 = pneg %p164
      %p258 = scmp.lt.s32.totalorder %s16, 1
      %s259 = scalar_select %p258, %s16, 1
      %s260 = smul.addr %s259, 13
      %s261 = smul.addr %s260, 8
      %s262 = scalar_lea.vmem %s5, %s261
      %p263 = scmp.lt.s32.totalorder %s16, 1
      %s264 = scalar_select %p263, %s16, 1
      %s265 = smul.addr %s264, 49
      %s266 = smul.addr %s265, 8
      %s267 = scalar_lea.vmem %s0, %s266
      %p268 = scmp.lt.s32.totalorder %s16, 1
      %s269 = scalar_select %p268, %s16, 1
      %s270 = smul.addr %s269, 5
      %s271 = smul.addr %s270, 8
      %s272 = scalar_lea.vmem %s1, %s271
      %p273 = scmp.lt.s32.totalorder %s16, 1
      %s274 = scalar_select %p273, %s16, 1
      %s275 = scalar_lea.vmem %s2, %s274
      %p276 = scmp.lt.s32.totalorder %s16, 1
      %s277 = scalar_select %p276, %s16, 1
      %s278 = scalar_lea.vmem %s3, %s277
      %p279 = scmp.lt.s32.totalorder %s16, 1
      %s280 = scalar_select %p279, %s16, 1
      %s281 = scalar_lea.vmem %s4, %s280
      %p282 = scmp.lt.s32.totalorder %s16, 1
      %s283 = scalar_select %p282, %s16, 1
      %s284 = smul.addr %s283, 13
      %s285 = smul.addr %s284, 8
      %s286 = scalar_lea.vmem %s5, %s285
      %v287 = vld [vmem:[%s267] sm:$0xff]
      %v288 = vld [vmem:[%s267 + $0x8] sm:$0xff]
      %v289 = vld [vmem:[%s267 + $0x10] sm:$0xff]
      %v290 = vld [vmem:[%s267 + $0x18] sm:$0xff]
      %v291 = vld [vmem:[%s267 + $0x20] sm:$0xff]
      %v292 = vld [vmem:[%s267 + $0x28] sm:$0xff]
      %v293 = vld [vmem:[%s267 + $0x30] sm:$0xff]
      %v294 = vld [vmem:[%s267 + $0x38] sm:$0xff]
      %v295 = vld [vmem:[%s267 + $0x40] sm:$0xff]
      %v296 = vld [vmem:[%s267 + $0x48] sm:$0xff]
      %v297 = vld [vmem:[%s267 + $0x50] sm:$0xff]
      %v298 = vld [vmem:[%s267 + $0x58] sm:$0xff]
      %v299 = vld [vmem:[%s267 + $0x60] sm:$0xff]
      %v300 = vld [vmem:[%s267 + $0x68] sm:$0xff]
      %v301 = vld [vmem:[%s267 + $0x70] sm:$0xff]
      %v302 = vld [vmem:[%s267 + $0x78] sm:$0xff]
      %v303 = vld [vmem:[%s267 + $0x80] sm:$0xff]
      %v304 = vld [vmem:[%s267 + $0x88] sm:$0xff]
      %v305 = vld [vmem:[%s267 + $0x90] sm:$0xff]
      %v306 = vld [vmem:[%s267 + $0x98] sm:$0xff]
      %v307 = vld [vmem:[%s267 + $0xa0] sm:$0xff]
      %v308 = vld [vmem:[%s267 + $0xa8] sm:$0xff]
      %v309 = vld [vmem:[%s267 + $0xb0] sm:$0xff]
      %v310 = vld [vmem:[%s267 + $0xb8] sm:$0xff]
      %v311 = vld [vmem:[%s267 + $0xc0] sm:$0xff]
      %v312 = vld [vmem:[%s267 + $0xc8] sm:$0xff]
      %v313 = vld [vmem:[%s267 + $0xd0] sm:$0xff]
      %v314 = vld [vmem:[%s267 + $0xd8] sm:$0xff]
      %v315 = vld [vmem:[%s267 + $0xe0] sm:$0xff]
      %v316 = vld [vmem:[%s267 + $0xe8] sm:$0xff]
      %v317 = vld [vmem:[%s267 + $0xf0] sm:$0xff]
      %v318 = vld [vmem:[%s267 + $0xf8] sm:$0xff]
      %v319 = vld [vmem:[%s267 + $0x100] sm:$0xff]
      %v320 = vld [vmem:[%s267 + $0x108] sm:$0xff]
      %v321 = vld [vmem:[%s267 + $0x110] sm:$0xff]
      %v322 = vld [vmem:[%s267 + $0x118] sm:$0xff]
      %v323 = vld [vmem:[%s267 + $0x120] sm:$0xff]
      %v324 = vld [vmem:[%s267 + $0x128] sm:$0xff]
      %v325 = vld [vmem:[%s267 + $0x130] sm:$0xff]
      %v326 = vld [vmem:[%s267 + $0x138] sm:$0xff]
      %v327 = vld [vmem:[%s267 + $0x140] sm:$0xff]
      %v328 = vld [vmem:[%s267 + $0x148] sm:$0xff]
      %v329 = vld [vmem:[%s267 + $0x150] sm:$0xff]
      %v330 = vld [vmem:[%s267 + $0x158] sm:$0xff]
      %v331 = vld [vmem:[%s267 + $0x160] sm:$0xff]
      %v332 = vld [vmem:[%s267 + $0x168] sm:$0xff]
      %v333 = vld [vmem:[%s267 + $0x170] sm:$0xff]
      %v334 = vld [vmem:[%s267 + $0x178] sm:$0xff]
      %v335 = vld [vmem:[%s267 + $0x180] sm:$0xff]
      %v336 = vld [vmem:[%s272] sm:$0xff]
      %v337 = vld [vmem:[%s272 + $0x8] sm:$0xff]
      %v338 = vld [vmem:[%s272 + $0x10] sm:$0xff]
      %v339 = vld [vmem:[%s272 + $0x18] sm:$0xff]
      %v340 = vld [vmem:[%s272 + $0x20] sm:$0xf]
      %v341 = vld [vmem:[%s275] sm:$0x1]
      %v343 = vperm.slane %v341, 0
      %vm345 = vcmask 293888
      %v347 = vsel %vm345, %v287, 0
      %v350 = vsel %vm345, %v288, 0
      %v353 = vsel %vm345, %v289, 0
      %v356 = vsel %vm345, %v290, 0
      %v359 = vsel %vm345, %v291, 0
      %v362 = vsel %vm345, %v292, 0
      %v365 = vsel %vm345, %v293, 0
      %v368 = vsel %vm345, %v294, 0
      %v371 = vsel %vm345, %v295, 0
      %v374 = vsel %vm345, %v296, 0
      %v377 = vsel %vm345, %v297, 0
      %v380 = vsel %vm345, %v298, 0
      %v383 = vsel %vm345, %v299, 0
      %v386 = vsel %vm345, %v300, 0
      %v389 = vsel %vm345, %v301, 0
      %v392 = vsel %vm345, %v302, 0
      %v395 = vsel %vm345, %v303, 0
      %v398 = vsel %vm345, %v304, 0
      %v401 = vsel %vm345, %v305, 0
      %v404 = vsel %vm345, %v306, 0
      %v407 = vsel %vm345, %v307, 0
      %v410 = vsel %vm345, %v308, 0
      %v413 = vsel %vm345, %v309, 0
      %v416 = vsel %vm345, %v310, 0
      %v419 = vsel %vm345, %v311, 0
      %v422 = vsel %vm345, %v312, 0
      %v425 = vsel %vm345, %v313, 0
      %v428 = vsel %vm345, %v314, 0
      %v431 = vsel %vm345, %v315, 0
      %v434 = vsel %vm345, %v316, 0
      %v437 = vsel %vm345, %v317, 0
      %v440 = vsel %vm345, %v318, 0
      %v443 = vsel %vm345, %v319, 0
      %v446 = vsel %vm345, %v320, 0
      %v449 = vsel %vm345, %v321, 0
      %v452 = vsel %vm345, %v322, 0
      %v455 = vsel %vm345, %v323, 0
      %v458 = vsel %vm345, %v324, 0
      %v461 = vsel %vm345, %v325, 0
      %v464 = vsel %vm345, %v326, 0
      %v467 = vsel %vm345, %v327, 0
      %v470 = vsel %vm345, %v328, 0
      %v473 = vsel %vm345, %v329, 0
      %v476 = vsel %vm345, %v330, 0
      %v479 = vsel %vm345, %v331, 0
      %v482 = vsel %vm345, %v332, 0
      %v485 = vsel %vm345, %v333, 0
      %v488 = vsel %vm345, %v334, 0
      %v491 = vsel %vm345, %v335, 0
      %vm493 = vcmask 1043456
      %v495 = vsel %vm493, %v340, 0
      %497 = vmatpush.msra.mxu0 0.0
      %498 = vmatpush.msra.mxu0 0.0
      %499 = vmatpush.msra.mxu0 0.0
      %500 = vmatpush.msra.mxu0 0.0
      %501 = vmatpush.msra.mxu0 0.0
      %502 = vmatpush.msra.mxu0 0.0
      %503 = vmatpush.msra.mxu0 0.0
      %504 = vmatpush.msra.mxu0 0.0
      %505 = vmatpush.msra.mxu0 0.0
      %506 = vmatpush.msra.mxu0 0.0
      %507 = vmatpush.msra.mxu0 0.0
      %508 = vmatpush.msra.mxu0 %v495
      %509 = vmatpush.msra.mxu0 %v339
      %510 = vmatpush.msra.mxu0 %v338
      %511 = vmatpush.msra.mxu0 %v337
      %512 = vmatpush.msra.mxu0 %v336
      %513 = vmatmul.f32.gmra.mxu0 %v347
      %v514 = vpop.f32.mrf.mxu0
      %v515 = vadd.f32 %v343, %v514
      %516 = vmatmul.f32.gmra.mxu0 %v350
      %v517 = vpop.f32.mrf.mxu0
      %v518 = vadd.f32 %v343, %v517
      %519 = vmatmul.f32.gmra.mxu0 %v353
      %v520 = vpop.f32.mrf.mxu0
      %v521 = vadd.f32 %v343, %v520
      %522 = vmatmul.f32.gmra.mxu0 %v356
      %v523 = vpop.f32.mrf.mxu0
      %v524 = vadd.f32 %v343, %v523
      %525 = vmatmul.f32.gmra.mxu0 %v359
      %v526 = vpop.f32.mrf.mxu0
      %v527 = vadd.f32 %v343, %v526
      %528 = vmatmul.f32.gmra.mxu0 %v362
      %v529 = vpop.f32.mrf.mxu0
      %v530 = vadd.f32 %v343, %v529
      %531 = vmatmul.f32.gmra.mxu0 %v365
      %v532 = vpop.f32.mrf.mxu0
      %v533 = vadd.f32 %v343, %v532
      %534 = vmatmul.f32.gmra.mxu0 %v368
      %v535 = vpop.f32.mrf.mxu0
      %v536 = vadd.f32 %v343, %v535
      %537 = vmatmul.f32.gmra.mxu0 %v371
      %v538 = vpop.f32.mrf.mxu0
      %v539 = vadd.f32 %v343, %v538
      %540 = vmatmul.f32.gmra.mxu0 %v374
      %v541 = vpop.f32.mrf.mxu0
      %v542 = vadd.f32 %v343, %v541
      %543 = vmatmul.f32.gmra.mxu0 %v377
      %v544 = vpop.f32.mrf.mxu0
      %v545 = vadd.f32 %v343, %v544
      %546 = vmatmul.f32.gmra.mxu0 %v380
      %v547 = vpop.f32.mrf.mxu0
      %v548 = vadd.f32 %v343, %v547
      %549 = vmatmul.f32.gmra.mxu0 %v383
      %v550 = vpop.f32.mrf.mxu0
      %v551 = vadd.f32 %v343, %v550
      %552 = vmatmul.f32.gmra.mxu0 %v386
      %v553 = vpop.f32.mrf.mxu0
      %v554 = vadd.f32 %v343, %v553
      %555 = vmatmul.f32.gmra.mxu0 %v389
      %v556 = vpop.f32.mrf.mxu0
      %v557 = vadd.f32 %v343, %v556
      %558 = vmatmul.f32.gmra.mxu0 %v392
      %v559 = vpop.f32.mrf.mxu0
      %v560 = vadd.f32 %v343, %v559
      %561 = vmatmul.f32.gmra.mxu0 %v395
      %v562 = vpop.f32.mrf.mxu0
      %v563 = vadd.f32 %v343, %v562
      %564 = vmatmul.f32.gmra.mxu0 %v398
      %v565 = vpop.f32.mrf.mxu0
      %v566 = vadd.f32 %v343, %v565
      %567 = vmatmul.f32.gmra.mxu0 %v401
      %v568 = vpop.f32.mrf.mxu0
      %v569 = vadd.f32 %v343, %v568
      %570 = vmatmul.f32.gmra.mxu0 %v404
      %v571 = vpop.f32.mrf.mxu0
      %v572 = vadd.f32 %v343, %v571
      %573 = vmatmul.f32.gmra.mxu0 %v407
      %v574 = vpop.f32.mrf.mxu0
      %v575 = vadd.f32 %v343, %v574
      %576 = vmatmul.f32.gmra.mxu0 %v410
      %v577 = vpop.f32.mrf.mxu0
      %v578 = vadd.f32 %v343, %v577
      %579 = vmatmul.f32.gmra.mxu0 %v413
      %v580 = vpop.f32.mrf.mxu0
      %v581 = vadd.f32 %v343, %v580
      %582 = vmatmul.f32.gmra.mxu0 %v416
      %v583 = vpop.f32.mrf.mxu0
      %v584 = vadd.f32 %v343, %v583
      %585 = vmatmul.f32.gmra.mxu0 %v419
      %v586 = vpop.f32.mrf.mxu0
      %v587 = vadd.f32 %v343, %v586
      %588 = vmatmul.f32.gmra.mxu0 %v422
      %v589 = vpop.f32.mrf.mxu0
      %v590 = vadd.f32 %v343, %v589
      %591 = vmatmul.f32.gmra.mxu0 %v425
      %v592 = vpop.f32.mrf.mxu0
      %v593 = vadd.f32 %v343, %v592
      %594 = vmatmul.f32.gmra.mxu0 %v428
      %v595 = vpop.f32.mrf.mxu0
      %v596 = vadd.f32 %v343, %v595
      %597 = vmatmul.f32.gmra.mxu0 %v431
      %v598 = vpop.f32.mrf.mxu0
      %v599 = vadd.f32 %v343, %v598
      %600 = vmatmul.f32.gmra.mxu0 %v434
      %v601 = vpop.f32.mrf.mxu0
      %v602 = vadd.f32 %v343, %v601
      %603 = vmatmul.f32.gmra.mxu0 %v437
      %v604 = vpop.f32.mrf.mxu0
      %v605 = vadd.f32 %v343, %v604
      %606 = vmatmul.f32.gmra.mxu0 %v440
      %v607 = vpop.f32.mrf.mxu0
      %v608 = vadd.f32 %v343, %v607
      %609 = vmatmul.f32.gmra.mxu0 %v443
      %v610 = vpop.f32.mrf.mxu0
      %v611 = vadd.f32 %v343, %v610
      %612 = vmatmul.f32.gmra.mxu0 %v446
      %v613 = vpop.f32.mrf.mxu0
      %v614 = vadd.f32 %v343, %v613
      %615 = vmatmul.f32.gmra.mxu0 %v449
      %v616 = vpop.f32.mrf.mxu0
      %v617 = vadd.f32 %v343, %v616
      %618 = vmatmul.f32.gmra.mxu0 %v452
      %v619 = vpop.f32.mrf.mxu0
      %v620 = vadd.f32 %v343, %v619
      %621 = vmatmul.f32.gmra.mxu0 %v455
      %v622 = vpop.f32.mrf.mxu0
      %v623 = vadd.f32 %v343, %v622
      %624 = vmatmul.f32.gmra.mxu0 %v458
      %v625 = vpop.f32.mrf.mxu0
      %v626 = vadd.f32 %v343, %v625
      %627 = vmatmul.f32.gmra.mxu0 %v461
      %v628 = vpop.f32.mrf.mxu0
      %v629 = vadd.f32 %v343, %v628
      %630 = vmatmul.f32.gmra.mxu0 %v464
      %v631 = vpop.f32.mrf.mxu0
      %v632 = vadd.f32 %v343, %v631
      %633 = vmatmul.f32.gmra.mxu0 %v467
      %v634 = vpop.f32.mrf.mxu0
      %v635 = vadd.f32 %v343, %v634
      %636 = vmatmul.f32.gmra.mxu0 %v470
      %v637 = vpop.f32.mrf.mxu0
      %v638 = vadd.f32 %v343, %v637
      %639 = vmatmul.f32.gmra.mxu0 %v473
      %v640 = vpop.f32.mrf.mxu0
      %v641 = vadd.f32 %v343, %v640
      %642 = vmatmul.f32.gmra.mxu0 %v476
      %v643 = vpop.f32.mrf.mxu0
      %v644 = vadd.f32 %v343, %v643
      %645 = vmatmul.f32.gmra.mxu0 %v479
      %v646 = vpop.f32.mrf.mxu0
      %v647 = vadd.f32 %v343, %v646
      %648 = vmatmul.f32.gmra.mxu0 %v482
      %v649 = vpop.f32.mrf.mxu0
      %v650 = vadd.f32 %v343, %v649
      %651 = vmatmul.f32.gmra.mxu0 %v485
      %v652 = vpop.f32.mrf.mxu0
      %v653 = vadd.f32 %v343, %v652
      %654 = vmatmul.f32.gmra.mxu0 %v488
      %v655 = vpop.f32.mrf.mxu0
      %v656 = vadd.f32 %v343, %v655
      %657 = vmatmul.f32.gmra.mxu0 %v491
      %v658 = vpop.f32.mrf.mxu0
      %v659 = vadd.f32 %v343, %v658
      %660 = vdwg.mxu0
      %vm661 = vcmask 64512
      %v662 = vsel %vm661, %v515, 0.0
      %v663 = vsel %vm661, %v518, 0.0
      %v664 = vadd.f32 %v662, %v663
      %v665 = vsel %vm661, %v521, 0.0
      %v666 = vadd.f32 %v664, %v665
      %v667 = vsel %vm661, %v524, 0.0
      %v668 = vadd.f32 %v666, %v667
      %v669 = vsel %vm661, %v527, 0.0
      %v670 = vadd.f32 %v668, %v669
      %v671 = vsel %vm661, %v530, 0.0
      %v672 = vadd.f32 %v670, %v671
      %v673 = vsel %vm661, %v533, 0.0
      %v674 = vadd.f32 %v672, %v673
      %v675 = vsel %vm661, %v536, 0.0
      %v676 = vadd.f32 %v674, %v675
      %v677 = vsel %vm661, %v539, 0.0
      %v678 = vadd.f32 %v676, %v677
      %v679 = vsel %vm661, %v542, 0.0
      %v680 = vadd.f32 %v678, %v679
      %v681 = vsel %vm661, %v545, 0.0
      %v682 = vadd.f32 %v680, %v681
      %v683 = vsel %vm661, %v548, 0.0
      %v684 = vadd.f32 %v682, %v683
      %v685 = vsel %vm661, %v551, 0.0
      %v686 = vadd.f32 %v684, %v685
      %v687 = vsel %vm661, %v554, 0.0
      %v688 = vadd.f32 %v686, %v687
      %v689 = vsel %vm661, %v557, 0.0
      %v690 = vadd.f32 %v688, %v689
      %v691 = vsel %vm661, %v560, 0.0
      %v692 = vadd.f32 %v690, %v691
      %v693 = vsel %vm661, %v563, 0.0
      %v694 = vadd.f32 %v692, %v693
      %v695 = vsel %vm661, %v566, 0.0
      %v696 = vadd.f32 %v694, %v695
      %v697 = vsel %vm661, %v569, 0.0
      %v698 = vadd.f32 %v696, %v697
      %v699 = vsel %vm661, %v572, 0.0
      %v700 = vadd.f32 %v698, %v699
      %v701 = vsel %vm661, %v575, 0.0
      %v702 = vadd.f32 %v700, %v701
      %v703 = vsel %vm661, %v578, 0.0
      %v704 = vadd.f32 %v702, %v703
      %v705 = vsel %vm661, %v581, 0.0
      %v706 = vadd.f32 %v704, %v705
      %v707 = vsel %vm661, %v584, 0.0
      %v708 = vadd.f32 %v706, %v707
      %v709 = vsel %vm661, %v587, 0.0
      %v710 = vadd.f32 %v708, %v709
      %v711 = vsel %vm661, %v590, 0.0
      %v712 = vadd.f32 %v710, %v711
      %v713 = vsel %vm661, %v593, 0.0
      %v714 = vadd.f32 %v712, %v713
      %v715 = vsel %vm661, %v596, 0.0
      %v716 = vadd.f32 %v714, %v715
      %v717 = vsel %vm661, %v599, 0.0
      %v718 = vadd.f32 %v716, %v717
      %v719 = vsel %vm661, %v602, 0.0
      %v720 = vadd.f32 %v718, %v719
      %v721 = vsel %vm661, %v605, 0.0
      %v722 = vadd.f32 %v720, %v721
      %v723 = vsel %vm661, %v608, 0.0
      %v724 = vadd.f32 %v722, %v723
      %v725 = vsel %vm661, %v611, 0.0
      %v726 = vadd.f32 %v724, %v725
      %v727 = vsel %vm661, %v614, 0.0
      %v728 = vadd.f32 %v726, %v727
      %v729 = vsel %vm661, %v617, 0.0
      %v730 = vadd.f32 %v728, %v729
      %v731 = vsel %vm661, %v620, 0.0
      %v732 = vadd.f32 %v730, %v731
      %v733 = vsel %vm661, %v623, 0.0
      %v734 = vadd.f32 %v732, %v733
      %v735 = vsel %vm661, %v626, 0.0
      %v736 = vadd.f32 %v734, %v735
      %v737 = vsel %vm661, %v629, 0.0
      %v738 = vadd.f32 %v736, %v737
      %v739 = vsel %vm661, %v632, 0.0
      %v740 = vadd.f32 %v738, %v739
      %v741 = vsel %vm661, %v635, 0.0
      %v742 = vadd.f32 %v740, %v741
      %v743 = vsel %vm661, %v638, 0.0
      %v744 = vadd.f32 %v742, %v743
      %v745 = vsel %vm661, %v641, 0.0
      %v746 = vadd.f32 %v744, %v745
      %v747 = vsel %vm661, %v644, 0.0
      %v748 = vadd.f32 %v746, %v747
      %v749 = vsel %vm661, %v647, 0.0
      %v750 = vadd.f32 %v748, %v749
      %v751 = vsel %vm661, %v650, 0.0
      %v752 = vadd.f32 %v750, %v751
      %v753 = vsel %vm661, %v653, 0.0
      %v754 = vadd.f32 %v752, %v753
      %v755 = vsel %vm661, %v656, 0.0
      %v756 = vadd.f32 %v754, %v755
      %v757 = vsel %vm661, %v659, 0.0
      %v758 = vadd.f32 %v756, %v757
      %v759 = vrot.slane %v758, 4
      %v760 = vadd.f32 %v758, %v759
      %v761 = vrot.slane %v760, 2
      %v762 = vadd.f32 %v760, %v761
      %v763 = vrot.slane %v762, 1
      %v764 = vadd.f32 %v762, %v763
      %v765 = vmul.f32 %v764, 0.0025510204
      %v766 = vsub.f32 %v515, %v765
      %v767 = vsub.f32 %v518, %v765
      %v768 = vsub.f32 %v521, %v765
      %v769 = vsub.f32 %v524, %v765
      %v770 = vsub.f32 %v527, %v765
      %v771 = vsub.f32 %v530, %v765
      %v772 = vsub.f32 %v533, %v765
      %v773 = vsub.f32 %v536, %v765
      %v774 = vsub.f32 %v539, %v765
      %v775 = vsub.f32 %v542, %v765
      %v776 = vsub.f32 %v545, %v765
      %v777 = vsub.f32 %v548, %v765
      %v778 = vsub.f32 %v551, %v765
      %v779 = vsub.f32 %v554, %v765
      %v780 = vsub.f32 %v557, %v765
      %v781 = vsub.f32 %v560, %v765
      %v782 = vsub.f32 %v563, %v765
      %v783 = vsub.f32 %v566, %v765
      %v784 = vsub.f32 %v569, %v765
      %v785 = vsub.f32 %v572, %v765
      %v786 = vsub.f32 %v575, %v765
      %v787 = vsub.f32 %v578, %v765
      %v788 = vsub.f32 %v581, %v765
      %v789 = vsub.f32 %v584, %v765
      %v790 = vsub.f32 %v587, %v765
      %v791 = vsub.f32 %v590, %v765
      %v792 = vsub.f32 %v593, %v765
      %v793 = vsub.f32 %v596, %v765
      %v794 = vsub.f32 %v599, %v765
      %v795 = vsub.f32 %v602, %v765
      %v796 = vsub.f32 %v605, %v765
      %v797 = vsub.f32 %v608, %v765
      %v798 = vsub.f32 %v611, %v765
      %v799 = vsub.f32 %v614, %v765
      %v800 = vsub.f32 %v617, %v765
      %v801 = vsub.f32 %v620, %v765
      %v802 = vsub.f32 %v623, %v765
      %v803 = vsub.f32 %v626, %v765
      %v804 = vsub.f32 %v629, %v765
      %v805 = vsub.f32 %v632, %v765
      %v806 = vsub.f32 %v635, %v765
      %v807 = vsub.f32 %v638, %v765
      %v808 = vsub.f32 %v641, %v765
      %v809 = vsub.f32 %v644, %v765
      %v810 = vsub.f32 %v647, %v765
      %v811 = vsub.f32 %v650, %v765
      %v812 = vsub.f32 %v653, %v765
      %v813 = vsub.f32 %v656, %v765
      %v814 = vsub.f32 %v659, %v765
      %v815 = vmul.f32 %v766, %v766
      %v816 = vmul.f32 %v767, %v767
      %v817 = vmul.f32 %v768, %v768
      %v818 = vmul.f32 %v769, %v769
      %v819 = vmul.f32 %v770, %v770
      %v820 = vmul.f32 %v771, %v771
      %v821 = vmul.f32 %v772, %v772
      %v822 = vmul.f32 %v773, %v773
      %v823 = vmul.f32 %v774, %v774
      %v824 = vmul.f32 %v775, %v775
      %v825 = vmul.f32 %v776, %v776
      %v826 = vmul.f32 %v777, %v777
      %v827 = vmul.f32 %v778, %v778
      %v828 = vmul.f32 %v779, %v779
      %v829 = vmul.f32 %v780, %v780
      %v830 = vmul.f32 %v781, %v781
      %v831 = vmul.f32 %v782, %v782
      %v832 = vmul.f32 %v783, %v783
      %v833 = vmul.f32 %v784, %v784
      %v834 = vmul.f32 %v785, %v785
      %v835 = vmul.f32 %v786, %v786
      %v836 = vmul.f32 %v787, %v787
      %v837 = vmul.f32 %v788, %v788
      %v838 = vmul.f32 %v789, %v789
      %v839 = vmul.f32 %v790, %v790
      %v840 = vmul.f32 %v791, %v791
      %v841 = vmul.f32 %v792, %v792
      %v842 = vmul.f32 %v793, %v793
      %v843 = vmul.f32 %v794, %v794
      %v844 = vmul.f32 %v795, %v795
      %v845 = vmul.f32 %v796, %v796
      %v846 = vmul.f32 %v797, %v797
      %v847 = vmul.f32 %v798, %v798
      %v848 = vmul.f32 %v799, %v799
      %v849 = vmul.f32 %v800, %v800
      %v850 = vmul.f32 %v801, %v801
      %v851 = vmul.f32 %v802, %v802
      %v852 = vmul.f32 %v803, %v803
      %v853 = vmul.f32 %v804, %v804
      %v854 = vmul.f32 %v805, %v805
      %v855 = vmul.f32 %v806, %v806
      %v856 = vmul.f32 %v807, %v807
      %v857 = vmul.f32 %v808, %v808
      %v858 = vmul.f32 %v809, %v809
      %v859 = vmul.f32 %v810, %v810
      %v860 = vmul.f32 %v811, %v811
      %v861 = vmul.f32 %v812, %v812
      %v862 = vmul.f32 %v813, %v813
      %v863 = vmul.f32 %v814, %v814
      %v864 = vsel %vm661, %v815, 0.0
      %v865 = vsel %vm661, %v816, 0.0
      %v866 = vadd.f32 %v864, %v865
      %v867 = vsel %vm661, %v817, 0.0
      %v868 = vadd.f32 %v866, %v867
      %v869 = vsel %vm661, %v818, 0.0
      %v870 = vadd.f32 %v868, %v869
      %v871 = vsel %vm661, %v819, 0.0
      %v872 = vadd.f32 %v870, %v871
      %v873 = vsel %vm661, %v820, 0.0
      %v874 = vadd.f32 %v872, %v873
      %v875 = vsel %vm661, %v821, 0.0
      %v876 = vadd.f32 %v874, %v875
      %v877 = vsel %vm661, %v822, 0.0
      %v878 = vadd.f32 %v876, %v877
      %v879 = vsel %vm661, %v823, 0.0
      %v880 = vadd.f32 %v878, %v879
      %v881 = vsel %vm661, %v824, 0.0
      %v882 = vadd.f32 %v880, %v881
      %v883 = vsel %vm661, %v825, 0.0
      %v884 = vadd.f32 %v882, %v883
      %v885 = vsel %vm661, %v826, 0.0
      %v886 = vadd.f32 %v884, %v885
      %v887 = vsel %vm661, %v827, 0.0
      %v888 = vadd.f32 %v886, %v887
      %v889 = vsel %vm661, %v828, 0.0
      %v890 = vadd.f32 %v888, %v889
      %v891 = vsel %vm661, %v829, 0.0
      %v892 = vadd.f32 %v890, %v891
      %v893 = vsel %vm661, %v830, 0.0
      %v894 = vadd.f32 %v892, %v893
      %v895 = vsel %vm661, %v831, 0.0
      %v896 = vadd.f32 %v894, %v895
      %v897 = vsel %vm661, %v832, 0.0
      %v898 = vadd.f32 %v896, %v897
      %v899 = vsel %vm661, %v833, 0.0
      %v900 = vadd.f32 %v898, %v899
      %v901 = vsel %vm661, %v834, 0.0
      %v902 = vadd.f32 %v900, %v901
      %v903 = vsel %vm661, %v835, 0.0
      %v904 = vadd.f32 %v902, %v903
      %v905 = vsel %vm661, %v836, 0.0
      %v906 = vadd.f32 %v904, %v905
      %v907 = vsel %vm661, %v837, 0.0
      %v908 = vadd.f32 %v906, %v907
      %v909 = vsel %vm661, %v838, 0.0
      %v910 = vadd.f32 %v908, %v909
      %v911 = vsel %vm661, %v839, 0.0
      %v912 = vadd.f32 %v910, %v911
      %v913 = vsel %vm661, %v840, 0.0
      %v914 = vadd.f32 %v912, %v913
      %v915 = vsel %vm661, %v841, 0.0
      %v916 = vadd.f32 %v914, %v915
      %v917 = vsel %vm661, %v842, 0.0
      %v918 = vadd.f32 %v916, %v917
      %v919 = vsel %vm661, %v843, 0.0
      %v920 = vadd.f32 %v918, %v919
      %v921 = vsel %vm661, %v844, 0.0
      %v922 = vadd.f32 %v920, %v921
      %v923 = vsel %vm661, %v845, 0.0
      %v924 = vadd.f32 %v922, %v923
      %v925 = vsel %vm661, %v846, 0.0
      %v926 = vadd.f32 %v924, %v925
      %v927 = vsel %vm661, %v847, 0.0
      %v928 = vadd.f32 %v926, %v927
      %v929 = vsel %vm661, %v848, 0.0
      %v930 = vadd.f32 %v928, %v929
      %v931 = vsel %vm661, %v849, 0.0
      %v932 = vadd.f32 %v930, %v931
      %v933 = vsel %vm661, %v850, 0.0
      %v934 = vadd.f32 %v932, %v933
      %v935 = vsel %vm661, %v851, 0.0
      %v936 = vadd.f32 %v934, %v935
      %v937 = vsel %vm661, %v852, 0.0
      %v938 = vadd.f32 %v936, %v937
      %v939 = vsel %vm661, %v853, 0.0
      %v940 = vadd.f32 %v938, %v939
      %v941 = vsel %vm661, %v854, 0.0
      %v942 = vadd.f32 %v940, %v941
      %v943 = vsel %vm661, %v855, 0.0
      %v944 = vadd.f32 %v942, %v943
      %v945 = vsel %vm661, %v856, 0.0
      %v946 = vadd.f32 %v944, %v945
      %v947 = vsel %vm661, %v857, 0.0
      %v948 = vadd.f32 %v946, %v947
      %v949 = vsel %vm661, %v858, 0.0
      %v950 = vadd.f32 %v948, %v949
      %v951 = vsel %vm661, %v859, 0.0
      %v952 = vadd.f32 %v950, %v951
      %v953 = vsel %vm661, %v860, 0.0
      %v954 = vadd.f32 %v952, %v953
      %v955 = vsel %vm661, %v861, 0.0
      %v956 = vadd.f32 %v954, %v955
      %v957 = vsel %vm661, %v862, 0.0
      %v958 = vadd.f32 %v956, %v957
      %v959 = vsel %vm661, %v863, 0.0
      %v960 = vadd.f32 %v958, %v959
      %v961 = vrot.slane %v960, 4
      %v962 = vadd.f32 %v960, %v961
      %v963 = vrot.slane %v962, 2
      %v964 = vadd.f32 %v962, %v963
      %v965 = vrot.slane %v964, 1
      %v966 = vadd.f32 %v964, %v965
      %v967 = vmul.f32 %v966, 0.0025510204
      %v968 = vld [vmem:[%s278] sm:$0x1]
      %v969 = vadd.f32 %v967, 1e-05
      %v970 = vrsqrt.pop %v969
      %v971 = vmul.f32 %v970, %v969
      %v972 = vmul.f32 %v971, %v970
      %v973 = vmul.f32 0.5, %v972
      %v974 = vsub.f32 1.5, %v973
      %v975 = vmul.f32 %v970, %v974
      %vm976 = vweird.f32 %v969
      %vm977 = vweird.f32 %v970
      %vm978 = vmor %vm976, %vm977
      %v979 = vsel %vm978, %v970, %v975
      %v980 = vmul.f32 %v968, %v979
      %v981 = vld [vmem:[%s281] sm:$0x1]
      %v982 = vmul.f32 %v765, %v980
      %v983 = vsub.f32 %v981, %v982
      %v985 = vperm.slane %v980, 0
      %v987 = vmul.f32 %v515, %v985
      %v988 = vmul.f32 %v518, %v985
      %v989 = vmul.f32 %v521, %v985
      %v990 = vmul.f32 %v524, %v985
      %v991 = vmul.f32 %v527, %v985
      %v992 = vmul.f32 %v530, %v985
      %v993 = vmul.f32 %v533, %v985
      %v994 = vmul.f32 %v536, %v985
      %v995 = vmul.f32 %v539, %v985
      %v996 = vmul.f32 %v542, %v985
      %v997 = vmul.f32 %v545, %v985
      %v998 = vmul.f32 %v548, %v985
      %v999 = vmul.f32 %v551, %v985
      %v1000 = vmul.f32 %v554, %v985
      %v1001 = vmul.f32 %v557, %v985
      %v1002 = vmul.f32 %v560, %v985
      %v1003 = vmul.f32 %v563, %v985
      %v1004 = vmul.f32 %v566, %v985
      %v1005 = vmul.f32 %v569, %v985
      %v1006 = vmul.f32 %v572, %v985
      %v1007 = vmul.f32 %v575, %v985
      %v1008 = vmul.f32 %v578, %v985
      %v1009 = vmul.f32 %v581, %v985
      %v1010 = vmul.f32 %v584, %v985
      %v1011 = vmul.f32 %v587, %v985
      %v1012 = vmul.f32 %v590, %v985
      %v1013 = vmul.f32 %v593, %v985
      %v1014 = vmul.f32 %v596, %v985
      %v1015 = vmul.f32 %v599, %v985
      %v1016 = vmul.f32 %v602, %v985
      %v1017 = vmul.f32 %v605, %v985
      %v1018 = vmul.f32 %v608, %v985
      %v1019 = vmul.f32 %v611, %v985
      %v1020 = vmul.f32 %v614, %v985
      %v1021 = vmul.f32 %v617, %v985
      %v1022 = vmul.f32 %v620, %v985
      %v1023 = vmul.f32 %v623, %v985
      %v1024 = vmul.f32 %v626, %v985
      %v1025 = vmul.f32 %v629, %v985
      %v1026 = vmul.f32 %v632, %v985
      %v1027 = vmul.f32 %v635, %v985
      %v1028 = vmul.f32 %v638, %v985
      %v1029 = vmul.f32 %v641, %v985
      %v1030 = vmul.f32 %v644, %v985
      %v1031 = vmul.f32 %v647, %v985
      %v1032 = vmul.f32 %v650, %v985
      %v1033 = vmul.f32 %v653, %v985
      %v1034 = vmul.f32 %v656, %v985
      %v1035 = vmul.f32 %v659, %v985
      %v1037 = vperm.slane %v983, 0
      %v1039 = vadd.f32 %v987, %v1037
      %v1040 = vadd.f32 %v988, %v1037
      %v1041 = vadd.f32 %v989, %v1037
      %v1042 = vadd.f32 %v990, %v1037
      %v1043 = vadd.f32 %v991, %v1037
      %v1044 = vadd.f32 %v992, %v1037
      %v1045 = vadd.f32 %v993, %v1037
      %v1046 = vadd.f32 %v994, %v1037
      %v1047 = vadd.f32 %v995, %v1037
      %v1048 = vadd.f32 %v996, %v1037
      %v1049 = vadd.f32 %v997, %v1037
      %v1050 = vadd.f32 %v998, %v1037
      %v1051 = vadd.f32 %v999, %v1037
      %v1052 = vadd.f32 %v1000, %v1037
      %v1053 = vadd.f32 %v1001, %v1037
      %v1054 = vadd.f32 %v1002, %v1037
      %v1055 = vadd.f32 %v1003, %v1037
      %v1056 = vadd.f32 %v1004, %v1037
      %v1057 = vadd.f32 %v1005, %v1037
      %v1058 = vadd.f32 %v1006, %v1037
      %v1059 = vadd.f32 %v1007, %v1037
      %v1060 = vadd.f32 %v1008, %v1037
      %v1061 = vadd.f32 %v1009, %v1037
      %v1062 = vadd.f32 %v1010, %v1037
      %v1063 = vadd.f32 %v1011, %v1037
      %v1064 = vadd.f32 %v1012, %v1037
      %v1065 = vadd.f32 %v1013, %v1037
      %v1066 = vadd.f32 %v1014, %v1037
      %v1067 = vadd.f32 %v1015, %v1037
      %v1068 = vadd.f32 %v1016, %v1037
      %v1069 = vadd.f32 %v1017, %v1037
      %v1070 = vadd.f32 %v1018, %v1037
      %v1071 = vadd.f32 %v1019, %v1037
      %v1072 = vadd.f32 %v1020, %v1037
      %v1073 = vadd.f32 %v1021, %v1037
      %v1074 = vadd.f32 %v1022, %v1037
      %v1075 = vadd.f32 %v1023, %v1037
      %v1076 = vadd.f32 %v1024, %v1037
      %v1077 = vadd.f32 %v1025, %v1037
      %v1078 = vadd.f32 %v1026, %v1037
      %v1079 = vadd.f32 %v1027, %v1037
      %v1080 = vadd.f32 %v1028, %v1037
      %v1081 = vadd.f32 %v1029, %v1037
      %v1082 = vadd.f32 %v1030, %v1037
      %v1083 = vadd.f32 %v1031, %v1037
      %v1084 = vadd.f32 %v1032, %v1037
      %v1085 = vadd.f32 %v1033, %v1037
      %v1086 = vadd.f32 %v1034, %v1037
      %v1087 = vadd.f32 %v1035, %v1037
      %v1088 = vmax.f32 %v1039, 0.0
      %v1089 = vmax.f32 %v1040, 0.0
      %v1090 = vmax.f32 %v1041, 0.0
      %v1091 = vmax.f32 %v1042, 0.0
      %v1092 = vmax.f32 %v1043, 0.0
      %v1093 = vmax.f32 %v1044, 0.0
      %v1094 = vmax.f32 %v1045, 0.0
      %v1095 = vmax.f32 %v1046, 0.0
      %v1096 = vmax.f32 %v1047, 0.0
      %v1097 = vmax.f32 %v1048, 0.0
      %v1098 = vmax.f32 %v1049, 0.0
      %v1099 = vmax.f32 %v1050, 0.0
      %v1100 = vmax.f32 %v1051, 0.0
      %v1101 = vmax.f32 %v1052, 0.0
      %v1102 = vmax.f32 %v1053, 0.0
      %v1103 = vmax.f32 %v1054, 0.0
      %v1104 = vmax.f32 %v1055, 0.0
      %v1105 = vmax.f32 %v1056, 0.0
      %v1106 = vmax.f32 %v1057, 0.0
      %v1107 = vmax.f32 %v1058, 0.0
      %v1108 = vmax.f32 %v1059, 0.0
      %v1109 = vmax.f32 %v1060, 0.0
      %v1110 = vmax.f32 %v1061, 0.0
      %v1111 = vmax.f32 %v1062, 0.0
      %v1112 = vmax.f32 %v1063, 0.0
      %v1113 = vmax.f32 %v1064, 0.0
      %v1114 = vmax.f32 %v1065, 0.0
      %v1115 = vmax.f32 %v1066, 0.0
      %v1116 = vmax.f32 %v1067, 0.0
      %v1117 = vmax.f32 %v1068, 0.0
      %v1118 = vmax.f32 %v1069, 0.0
      %v1119 = vmax.f32 %v1070, 0.0
      %v1120 = vmax.f32 %v1071, 0.0
      %v1121 = vmax.f32 %v1072, 0.0
      %v1122 = vmax.f32 %v1073, 0.0
      %v1123 = vmax.f32 %v1074, 0.0
      %v1124 = vmax.f32 %v1075, 0.0
      %v1125 = vmax.f32 %v1076, 0.0
      %v1126 = vmax.f32 %v1077, 0.0
      %v1127 = vmax.f32 %v1078, 0.0
      %v1128 = vmax.f32 %v1079, 0.0
      %v1129 = vmax.f32 %v1080, 0.0
      %v1130 = vmax.f32 %v1081, 0.0
      %v1131 = vmax.f32 %v1082, 0.0
      %v1132 = vmax.f32 %v1083, 0.0
      %v1133 = vmax.f32 %v1084, 0.0
      %v1134 = vmax.f32 %v1085, 0.0
      %v1135 = vmax.f32 %v1086, 0.0
      %v1136 = vmax.f32 %v1087, 0.0
      %1137 = vst.msk [vmem:[#allocation2] sm:$0xff] %vm661, %v1088
      %1138 = vst.msk [vmem:[#allocation2 + $0x8] sm:$0xff] %vm661, %v1089
      %1139 = vst.msk [vmem:[#allocation2 + $0x10] sm:$0xff] %vm661, %v1090
      %1140 = vst.msk [vmem:[#allocation2 + $0x18] sm:$0xff] %vm661, %v1091
      %1141 = vst.msk [vmem:[#allocation2 + $0x20] sm:$0xff] %vm661, %v1092
      %1142 = vst.msk [vmem:[#allocation2 + $0x28] sm:$0xff] %vm661, %v1093
      %1143 = vst.msk [vmem:[#allocation2 + $0x30] sm:$0xff] %vm661, %v1094
      %1144 = vst.msk [vmem:[#allocation2 + $0x38] sm:$0xff] %vm661, %v1095
      %1145 = vst.msk [vmem:[#allocation2 + $0x40] sm:$0xff] %vm661, %v1096
      %1146 = vst.msk [vmem:[#allocation2 + $0x48] sm:$0xff] %vm661, %v1097
      %1147 = vst.msk [vmem:[#allocation2 + $0x50] sm:$0xff] %vm661, %v1098
      %1148 = vst.msk [vmem:[#allocation2 + $0x58] sm:$0xff] %vm661, %v1099
      %1149 = vst.msk [vmem:[#allocation2 + $0x60] sm:$0xff] %vm661, %v1100
      %1150 = vst.msk [vmem:[#allocation2 + $0x68] sm:$0xff] %vm661, %v1101
      %1151 = vst.msk [vmem:[#allocation2 + $0x70] sm:$0xff] %vm661, %v1102
      %1152 = vst.msk [vmem:[#allocation2 + $0x78] sm:$0xff] %vm661, %v1103
      %1153 = vst.msk [vmem:[#allocation2 + $0x80] sm:$0xff] %vm661, %v1104
      %1154 = vst.msk [vmem:[#allocation2 + $0x88] sm:$0xff] %vm661, %v1105
      %1155 = vst.msk [vmem:[#allocation2 + $0x90] sm:$0xff] %vm661, %v1106
      %1156 = vst.msk [vmem:[#allocation2 + $0x98] sm:$0xff] %vm661, %v1107
      %1157 = vst.msk [vmem:[#allocation2 + $0xa0] sm:$0xff] %vm661, %v1108
      %1158 = vst.msk [vmem:[#allocation2 + $0xa8] sm:$0xff] %vm661, %v1109
      %1159 = vst.msk [vmem:[#allocation2 + $0xb0] sm:$0xff] %vm661, %v1110
      %1160 = vst.msk [vmem:[#allocation2 + $0xb8] sm:$0xff] %vm661, %v1111
      %1161 = vst.msk [vmem:[#allocation2 + $0xc0] sm:$0xff] %vm661, %v1112
      %1162 = vst.msk [vmem:[#allocation2 + $0xc8] sm:$0xff] %vm661, %v1113
      %1163 = vst.msk [vmem:[#allocation2 + $0xd0] sm:$0xff] %vm661, %v1114
      %1164 = vst.msk [vmem:[#allocation2 + $0xd8] sm:$0xff] %vm661, %v1115
      %1165 = vst.msk [vmem:[#allocation2 + $0xe0] sm:$0xff] %vm661, %v1116
      %1166 = vst.msk [vmem:[#allocation2 + $0xe8] sm:$0xff] %vm661, %v1117
      %1167 = vst.msk [vmem:[#allocation2 + $0xf0] sm:$0xff] %vm661, %v1118
      %1168 = vst.msk [vmem:[#allocation2 + $0xf8] sm:$0xff] %vm661, %v1119
      %1169 = vst.msk [vmem:[#allocation2 + $0x100] sm:$0xff] %vm661, %v1120
      %1170 = vst.msk [vmem:[#allocation2 + $0x108] sm:$0xff] %vm661, %v1121
      %1171 = vst.msk [vmem:[#allocation2 + $0x110] sm:$0xff] %vm661, %v1122
      %1172 = vst.msk [vmem:[#allocation2 + $0x118] sm:$0xff] %vm661, %v1123
      %1173 = vst.msk [vmem:[#allocation2 + $0x120] sm:$0xff] %vm661, %v1124
      %1174 = vst.msk [vmem:[#allocation2 + $0x128] sm:$0xff] %vm661, %v1125
      %1175 = vst.msk [vmem:[#allocation2 + $0x130] sm:$0xff] %vm661, %v1126
      %1176 = vst.msk [vmem:[#allocation2 + $0x138] sm:$0xff] %vm661, %v1127
      %1177 = vst.msk [vmem:[#allocation2 + $0x140] sm:$0xff] %vm661, %v1128
      %1178 = vst.msk [vmem:[#allocation2 + $0x148] sm:$0xff] %vm661, %v1129
      %1179 = vst.msk [vmem:[#allocation2 + $0x150] sm:$0xff] %vm661, %v1130
      %1180 = vst.msk [vmem:[#allocation2 + $0x158] sm:$0xff] %vm661, %v1131
      %1181 = vst.msk [vmem:[#allocation2 + $0x160] sm:$0xff] %vm661, %v1132
      %1182 = vst.msk [vmem:[#allocation2 + $0x168] sm:$0xff] %vm661, %v1133
      %1183 = vst.msk [vmem:[#allocation2 + $0x170] sm:$0xff] %vm661, %v1134
      %1184 = vst.msk [vmem:[#allocation2 + $0x178] sm:$0xff] %vm661, %v1135
      %1185 = vst.msk [vmem:[#allocation2 + $0x180] sm:$0xff] %vm661, %v1136
      %v1186 = vld [vmem:[#allocation2] ss:$2 sm:$0x7f]
      %s1187 = scalar_lea.vmem [#allocation2], 1
      %v1188 = vld [vmem:[%s1187] ss:$2 sm:$0x7f]
      %s1189 = scalar_lea.vmem [#allocation2], 14
      %v1190 = vld [vmem:[%s1189] ss:$2 sm:$0x7f]
      %s1191 = scalar_lea.vmem [#allocation2], 15
      %v1192 = vld [vmem:[%s1191] ss:$2 sm:$0x7f]
      %v1193 = vmax.f32 %v1186, %v1188
      %v1194 = vmax.f32 %v1190, %v1192
      %v1195 = vmax.f32 %v1193, %v1194
      %vm1196 = vcmask 63488
      %1197 = vst.msk [vmem:[%s286] sm:$0x7f] %vm1196, %v1195
      %s1198 = scalar_lea.vmem [#allocation2], 28
      %v1199 = vld [vmem:[%s1198] ss:$2 sm:$0x7f]
      %s1200 = scalar_lea.vmem [#allocation2], 29
      %v1201 = vld [vmem:[%s1200] ss:$2 sm:$0x7f]
      %s1202 = scalar_lea.vmem [#allocation2], 42
      %v1203 = vld [vmem:[%s1202] ss:$2 sm:$0x7f]
      %s1204 = scalar_lea.vmem [#allocation2], 43
      %v1205 = vld [vmem:[%s1204] ss:$2 sm:$0x7f]
      %v1206 = vmax.f32 %v1199, %v1201
      %v1207 = vmax.f32 %v1203, %v1205
      %v1208 = vmax.f32 %v1206, %v1207
      %1209 = vst.msk [vmem:[%s286 + $0x7] sm:$0x7f] %vm1196, %v1208
      %s1210 = scalar_lea.vmem [#allocation2], 56
      %v1211 = vld [vmem:[%s1210] ss:$2 sm:$0x7f]
      %s1212 = scalar_lea.vmem [#allocation2], 57
      %v1213 = vld [vmem:[%s1212] ss:$2 sm:$0x7f]
      %s1214 = scalar_lea.vmem [#allocation2], 70
      %v1215 = vld [vmem:[%s1214] ss:$2 sm:$0x7f]
      %s1216 = scalar_lea.vmem [#allocation2], 71
      %v1217 = vld [vmem:[%s1216] ss:$2 sm:$0x7f]
      %v1218 = vmax.f32 %v1211, %v1213
      %v1219 = vmax.f32 %v1215, %v1217
      %v1220 = vmax.f32 %v1218, %v1219
      %1221 = vst.msk [vmem:[%s286 + $0xe] sm:$0x7f] %vm1196, %v1220
      %s1222 = scalar_lea.vmem [#allocation2], 84
      %v1223 = vld [vmem:[%s1222] ss:$2 sm:$0x7f]
      %s1224 = scalar_lea.vmem [#allocation2], 85
      %v1225 = vld [vmem:[%s1224] ss:$2 sm:$0x7f]
      %s1226 = scalar_lea.vmem [#allocation2], 98
      %v1227 = vld [vmem:[%s1226] ss:$2 sm:$0x7f]
      %s1228 = scalar_lea.vmem [#allocation2], 99
      %v1229 = vld [vmem:[%s1228] ss:$2 sm:$0x7f]
      %v1230 = vmax.f32 %v1223, %v1225
      %v1231 = vmax.f32 %v1227, %v1229
      %v1232 = vmax.f32 %v1230, %v1231
      %1233 = vst.msk [vmem:[%s286 + $0x15] sm:$0x7f] %vm1196, %v1232
      %s1234 = scalar_lea.vmem [#allocation2], 112
      %v1235 = vld [vmem:[%s1234] ss:$2 sm:$0x7f]
      %s1236 = scalar_lea.vmem [#allocation2], 113
      %v1237 = vld [vmem:[%s1236] ss:$2 sm:$0x7f]
      %s1238 = scalar_lea.vmem [#allocation2], 126
      %v1239 = vld [vmem:[%s1238] ss:$2 sm:$0x7f]
      %s1240 = scalar_lea.vmem [#allocation2], 127
      %v1241 = vld [vmem:[%s1240] ss:$2 sm:$0x7f]
      %v1242 = vmax.f32 %v1235, %v1237
      %v1243 = vmax.f32 %v1239, %v1241
      %v1244 = vmax.f32 %v1242, %v1243
      %1245 = vst.msk [vmem:[%s286 + $0x1c] sm:$0x7f] %vm1196, %v1244
      %s1246 = scalar_lea.vmem [#allocation2], 140
      %v1247 = vld [vmem:[%s1246] ss:$2 sm:$0x7f]
      %s1248 = scalar_lea.vmem [#allocation2], 141
      %v1249 = vld [vmem:[%s1248] ss:$2 sm:$0x7f]
      %s1250 = scalar_lea.vmem [#allocation2], 154
      %v1251 = vld [vmem:[%s1250] ss:$2 sm:$0x7f]
      %s1252 = scalar_lea.vmem [#allocation2], 155
      %v1253 = vld [vmem:[%s1252] ss:$2 sm:$0x7f]
      %v1254 = vmax.f32 %v1247, %v1249
      %v1255 = vmax.f32 %v1251, %v1253
      %v1256 = vmax.f32 %v1254, %v1255
      %1257 = vst.msk [vmem:[%s286 + $0x23] sm:$0x7f] %vm1196, %v1256
      %s1258 = scalar_lea.vmem [#allocation2], 168
      %v1259 = vld [vmem:[%s1258] ss:$2 sm:$0x7f]
      %s1260 = scalar_lea.vmem [#allocation2], 169
      %v1261 = vld [vmem:[%s1260] ss:$2 sm:$0x7f]
      %s1262 = scalar_lea.vmem [#allocation2], 182
      %v1263 = vld [vmem:[%s1262] ss:$2 sm:$0x7f]
      %s1264 = scalar_lea.vmem [#allocation2], 183
      %v1265 = vld [vmem:[%s1264] ss:$2 sm:$0x7f]
      %v1266 = vmax.f32 %v1259, %v1261
      %v1267 = vmax.f32 %v1263, %v1265
      %v1268 = vmax.f32 %v1266, %v1267
      %1269 = vst.msk [vmem:[%s286 + $0x2a] sm:$0x7f] %vm1196, %v1268
      %s1270 = scalar_lea.vmem [#allocation2], 196
      %v1271 = vld [vmem:[%s1270] ss:$2 sm:$0x7f]
      %s1272 = scalar_lea.vmem [#allocation2], 197
      %v1273 = vld [vmem:[%s1272] ss:$2 sm:$0x7f]
      %s1274 = scalar_lea.vmem [#allocation2], 210
      %v1275 = vld [vmem:[%s1274] ss:$2 sm:$0x7f]
      %s1276 = scalar_lea.vmem [#allocation2], 211
      %v1277 = vld [vmem:[%s1276] ss:$2 sm:$0x7f]
      %v1278 = vmax.f32 %v1271, %v1273
      %v1279 = vmax.f32 %v1275, %v1277
      %v1280 = vmax.f32 %v1278, %v1279
      %1281 = vst.msk [vmem:[%s286 + $0x31] sm:$0x7f] %vm1196, %v1280
      %s1282 = scalar_lea.vmem [#allocation2], 224
      %v1283 = vld [vmem:[%s1282] ss:$2 sm:$0x7f]
      %s1284 = scalar_lea.vmem [#allocation2], 225
      %v1285 = vld [vmem:[%s1284] ss:$2 sm:$0x7f]
      %s1286 = scalar_lea.vmem [#allocation2], 238
      %v1287 = vld [vmem:[%s1286] ss:$2 sm:$0x7f]
      %s1288 = scalar_lea.vmem [#allocation2], 239
      %v1289 = vld [vmem:[%s1288] ss:$2 sm:$0x7f]
      %v1290 = vmax.f32 %v1283, %v1285
      %v1291 = vmax.f32 %v1287, %v1289
      %v1292 = vmax.f32 %v1290, %v1291
      %1293 = vst.msk [vmem:[%s286 + $0x38] sm:$0x7f] %vm1196, %v1292
      %s1294 = scalar_lea.vmem [#allocation2], 252
      %v1295 = vld [vmem:[%s1294] ss:$2 sm:$0x7f]
      %s1296 = scalar_lea.vmem [#allocation2], 253
      %v1297 = vld [vmem:[%s1296] ss:$2 sm:$0x7f]
      %s1298 = scalar_lea.vmem [#allocation2], 266
      %v1299 = vld [vmem:[%s1298] ss:$2 sm:$0x7f]
      %s1300 = scalar_lea.vmem [#allocation2], 267
      %v1301 = vld [vmem:[%s1300] ss:$2 sm:$0x7f]
      %v1302 = vmax.f32 %v1295, %v1297
      %v1303 = vmax.f32 %v1299, %v1301
      %v1304 = vmax.f32 %v1302, %v1303
      %1305 = vst.msk [vmem:[%s286 + $0x3f] sm:$0x7f] %vm1196, %v1304
      %s1306 = scalar_lea.vmem [#allocation2], 280
      %v1307 = vld [vmem:[%s1306] ss:$2 sm:$0x7f]
      %s1308 = scalar_lea.vmem [#allocation2], 281
      %v1309 = vld [vmem:[%s1308] ss:$2 sm:$0x7f]
      %s1310 = scalar_lea.vmem [#allocation2], 294
      %v1311 = vld [vmem:[%s1310] ss:$2 sm:$0x7f]
      %s1312 = scalar_lea.vmem [#allocation2], 295
      %v1313 = vld [vmem:[%s1312] ss:$2 sm:$0x7f]
      %v1314 = vmax.f32 %v1307, %v1309
      %v1315 = vmax.f32 %v1311, %v1313
      %v1316 = vmax.f32 %v1314, %v1315
      %1317 = vst.msk [vmem:[%s286 + $0x46] sm:$0x7f] %vm1196, %v1316
      %s1318 = scalar_lea.vmem [#allocation2], 308
      %v1319 = vld [vmem:[%s1318] ss:$2 sm:$0x7f]
      %s1320 = scalar_lea.vmem [#allocation2], 309
      %v1321 = vld [vmem:[%s1320] ss:$2 sm:$0x7f]
      %s1322 = scalar_lea.vmem [#allocation2], 322
      %v1323 = vld [vmem:[%s1322] ss:$2 sm:$0x7f]
      %s1324 = scalar_lea.vmem [#allocation2], 323
      %v1325 = vld [vmem:[%s1324] ss:$2 sm:$0x7f]
      %v1326 = vmax.f32 %v1319, %v1321
      %v1327 = vmax.f32 %v1323, %v1325
      %v1328 = vmax.f32 %v1326, %v1327
      %1329 = vst.msk [vmem:[%s286 + $0x4d] sm:$0x7f] %vm1196, %v1328
      %s1330 = scalar_lea.vmem [#allocation2], 336
      %v1331 = vld [vmem:[%s1330] ss:$2 sm:$0x7f]
      %s1332 = scalar_lea.vmem [#allocation2], 337
      %v1333 = vld [vmem:[%s1332] ss:$2 sm:$0x7f]
      %s1334 = scalar_lea.vmem [#allocation2], 350
      %v1335 = vld [vmem:[%s1334] ss:$2 sm:$0x7f]
      %s1336 = scalar_lea.vmem [#allocation2], 351
      %v1337 = vld [vmem:[%s1336] ss:$2 sm:$0x7f]
      %v1338 = vmax.f32 %v1331, %v1333
      %v1339 = vmax.f32 %v1335, %v1337
      %v1340 = vmax.f32 %v1338, %v1339
      %1341 = vst.msk [vmem:[%s286 + $0x54] sm:$0x7f] %vm1196, %v1340
      %s1342 = scalar_lea.vmem [#allocation2], 364
      %v1343 = vld [vmem:[%s1342] ss:$2 sm:$0x7f]
      %s1344 = scalar_lea.vmem [#allocation2], 365
      %v1345 = vld [vmem:[%s1344] ss:$2 sm:$0x7f]
      %s1346 = scalar_lea.vmem [#allocation2], 378
      %v1347 = vld [vmem:[%s1346] ss:$2 sm:$0x7f]
      %s1348 = scalar_lea.vmem [#allocation2], 379
      %v1349 = vld [vmem:[%s1348] ss:$2 sm:$0x7f]
      %v1350 = vmax.f32 %v1343, %v1345
      %v1351 = vmax.f32 %v1347, %v1349
      %v1352 = vmax.f32 %v1350, %v1351
      %1353 = vst.msk [vmem:[%s286 + $0x5b] sm:$0x7f] %vm1196, %v1352
      %p1354 = scmp.lt.s32.totalorder %s16, 1
      %s1355 = scalar_select %p1354, %s16, 1
      %s1356 = smul.addr %s1355, 13
      %s1357 = smul.addr %s1356, 8
      %s1358 = scalar_lea.vmem %s5, %s1357
      // Predicated region
      $region41: #{parallel_convolution_forward.1} parent=39 // pred_check
        %p1359 = pneg %p164
      $region42: #{parallel_convolution_forward.1} parent=39 // pred_check_branch
        %1361 = sbr.rel (%p1359) target = $region44
      $region43: #{parallel_convolution_forward.1} parent=39 // pred_region
        _
      $region44: #{parallel_convolution_forward.1} parent=39 // pred_fallthru
        _
    $region40: #{parallel_convolution_forward.1} parent=5 // pred_fallthru
      _
    %p1362 = scmp.le.s32.totalorder 2, %s11
    // Predicated region
    $region45: #{parallel_convolution_forward.1} parent=5 // pred_check
      %p1363 = pneg %p1362
    $region46: #{parallel_convolution_forward.1} parent=5 // pred_check_branch
      %1365 = sbr.rel (%p1363) target = $region48
    $region47: #{parallel_convolution_forward.1} parent=5 // pred_region
      %s1366 = ssub.s32 %s11, 2
      // Predicated region
      $region49: #{parallel_convolution_forward.1} parent=47 // pred_check
        %p1367 = pneg %p170
      $region50: #{parallel_convolution_forward.1} parent=47 // pred_check_branch
        %1369 = sbr.rel (%p1367) target = $region52
      $region51: #{parallel_convolution_forward.1} parent=47 // pred_region
        %p1370 = scmp.lt.s32.totalorder %s17, 1
        %s1371 = scalar_select %p1370, %s17, 1
        %s1372 = smul.addr %s1371, 13
        %s1373 = smul.addr %s1372, 8
        %s1374 = scalar_lea.vmem %s5, %s1373
      $region52: #{parallel_convolution_forward.1} parent=47 // pred_fallthru
        _
    $region48: #{parallel_convolution_forward.1} parent=5 // pred_fallthru
      _
  $region6: #{parallel_convolution_forward.1} parent=0 // loop_footer
    %s15 = sadd.s32 1, %s11
  $region7: #{parallel_convolution_forward.1} parent=0 // loop_footer_branch
    %10 = sbr.rel target = $region3
  $region8: #{parallel_convolution_forward.1} parent=0 // loop_exit
    _

</llo_original>
